<compile_context>
chip_gen: v6e
topology: v6e:2x2x1
jax: 0.10.0
libtpu: 0.0.40
codegen_flags: <defaults>
</compile_context>

<pallas_src>
import functools

import jax
import jax.numpy as jnp
from jax.experimental import pallas as pl
from jax.experimental.pallas import tpu as pltpu


def _round_up(x, m):
    return (x + m - 1) // m * m


def _pad_dim(x, axis, target):
    pad = target - x.shape[axis]
    if pad == 0:
        return x
    widths = [(0, 0)] * x.ndim
    widths[axis] = (0, pad)
    return jnp.pad(x, widths)


def _attn_decoder_kernel(
    emb_ref,    # (B, H)      bf16  embedded input token
    h_ref,      # (B, H)      f32   previous hidden state (layer 0)
    enc_ref,    # (B, S, H)   bf16  encoder outputs
    wih_ref,    # (3, H, H)   bf16  per-gate W_ih^T  (gate order r, z, n)
    whh_ref,    # (3, H, H)   bf16  per-gate W_hh^T
    bih_ref,    # (3, 1, H)   f32
    bhh_ref,    # (3, 1, H)   f32
    wc_ref,     # (2, H, H)   bf16  concat Linear weight^T split into [h | ctx]
    bc_ref,     # (1, H)      f32
    wo_ref,     # (H, TV)     bf16  vocab-tile j of W_out^T
    bo_ref,     # (1, TV)     f32   vocab-tile j of b_out
    out_ref,    # (B, TV)     f32   logits tile j
    hid_ref,    # (B, H)      f32   new hidden state (resident across grid)
    attn_ref,   # (B, 1, S)   f32   attention weights (resident across grid)
    cat_ref,    # (B, H)      bf16  VMEM scratch: concat_out
):
    j = pl.program_id(0)

    # ---- GRU + attention + concat: only once, on the first vocab tile ----
    @pl.when(j == 0)
    def _():
        Bk, Hk = h_ref.shape
        cdt = cat_ref.dtype

        x = emb_ref[...].astype(cdt)       # (B, H) bf16
        h = h_ref[...]                     # (B, H) f32
        hb = h.astype(cdt)

        # GRU cell (PyTorch semantics), three lane-aligned per-gate matmuls.
        def gates(g):
            gi = jnp.dot(x, wih_ref[g], preferred_element_type=jnp.float32) + bih_ref[g]
            gh = jnp.dot(hb, whh_ref[g], preferred_element_type=jnp.float32) + bhh_ref[g]
            return gi, gh

        i_r, h_r = gates(0)
        i_z, h_z = gates(1)
        i_n, h_n = gates(2)
        r = jax.nn.sigmoid(i_r + h_r)
        z = jax.nn.sigmoid(i_z + h_z)
        n = jnp.tanh(i_n + r * h_n)
        h_new = (1.0 - z) * n + z * h                                  # (B, H) f32
        hid_ref[...] = h_new
        h_new_b = h_new.astype(cdt)                                    # cast once

        # Dot attention on the MXU: scores[b, 1, s] = sum_h h_new[b,h] * enc[b,s,h]
        enc = enc_ref[...]                                             # (B, S, H) bf16
        q = jnp.reshape(h_new_b, (Bk, 1, Hk))                          # (B, 1, H)
        scores = jnp.einsum('bqh,bsh->bqs', q, enc,
                            preferred_element_type=jnp.float32)        # (B, 1, S)
        m = jnp.max(scores, axis=-1, keepdims=True)
        e = jnp.exp(scores - m)
        denom = jnp.sum(e, axis=-1, keepdims=True)
        attn = e * pl.reciprocal(denom, approx=True)                   # (B, 1, S)
        attn_ref[...] = attn

        # Context, also on the MXU: ctx[b, h] = sum_s attn[b,s] * enc[b,s,h]
        ctx = jnp.einsum('bqs,bsh->bqh', attn.astype(cdt), enc,
                         preferred_element_type=jnp.float32)           # (B, 1, H)
        ctx = jnp.reshape(ctx, (Bk, Hk)).astype(cdt)

        # concat Linear + tanh without lane-axis concatenation:
        # tanh([h_new, ctx] @ Wc^T + bc) == tanh(h_new @ Wc_h + ctx @ Wc_c + bc)
        pre = (jnp.dot(h_new_b, wc_ref[0], preferred_element_type=jnp.float32)
               + jnp.dot(ctx, wc_ref[1], preferred_element_type=jnp.float32)
               + bc_ref[...])
        cat_ref[...] = jnp.tanh(pre).astype(cdt)

    # ---- vocab projection: one lane-dense (B, TV) logits tile per grid step ----
    out_ref[...] = (
        jnp.dot(cat_ref[...], wo_ref[...], preferred_element_type=jnp.float32)
        + bo_ref[...]
    )


def prepare_params(params, param_dtype=jnp.bfloat16):
    """One-time weight preparation (transpose / split / pad / cast to bf16)."""
    H = params["embedding"].shape[1]
    V = params["w_out"].shape[0]
    V128 = _round_up(V, 128)
    tv = min(512, V128)
    v_pad = _round_up(V, tv)

    wc = params["w_concat"]                                        # (H, 2H)
    return {
        "embedding": params["embedding"].astype(param_dtype),      # (V, H)
        "wih": jnp.transpose(params["w_ih"].reshape(3, H, H), (0, 2, 1)).astype(param_dtype),
        "whh": jnp.transpose(params["w_hh"].reshape(3, H, H), (0, 2, 1)).astype(param_dtype),
        "bih": params["b_ih"].reshape(3, 1, H).astype(jnp.float32),
        "bhh": params["b_hh"].reshape(3, 1, H).astype(jnp.float32),
        "wcat": jnp.stack([wc[:, :H].T, wc[:, H:].T]).astype(param_dtype),   # (2, H, H)
        "bcat": params["b_concat"].reshape(1, H).astype(jnp.float32),
        "wo": _pad_dim(params["w_out"].T, 1, v_pad).astype(param_dtype),     # (H, V_pad)
        "bo": _pad_dim(params["b_out"], 0, v_pad).reshape(1, v_pad).astype(jnp.float32),
    }


def attn_decoder_step(prep, input_seq, last_hidden, encoder_outputs, *, output_size):
    """Single decode step.  input_seq (B,) int32, last_hidden (1,B,H) f32,
    encoder_outputs (S,B,H) f32.  Returns (logits (B,V), hidden (1,B,H),
    attn_weights (B,1,S))."""
    H = prep["embedding"].shape[1]
    V_pad = prep["wo"].shape[1]
    TV = min(512, V_pad)
    num_v = V_pad // TV
    S, B, _ = encoder_outputs.shape
    B_pad = _round_up(B, 8)
    pdt = prep["wo"].dtype

    # Glue: embedding gather, batch padding, layout + dtype prep (fused copies).
    x = _pad_dim(jnp.take(prep["embedding"], input_seq, axis=0), 0, B_pad)          # (B_pad, H)
    h0 = _pad_dim(last_hidden[0].astype(jnp.float32), 0, B_pad)                      # (B_pad, H)
    enc = _pad_dim(jnp.transpose(encoder_outputs, (1, 0, 2)).astype(pdt), 0, B_pad)  # (B_pad,S,H)

    def full(shape):
        nd = len(shape)
        return pl.BlockSpec(shape, lambda j, _nd=nd: (0,) * _nd)

    out, hid, attn = pl.pallas_call(
        _attn_decoder_kernel,
        out_shape=(
            jax.ShapeDtypeStruct((B_pad, V_pad), jnp.float32),
            jax.ShapeDtypeStruct((B_pad, H), jnp.float32),
            jax.ShapeDtypeStruct((B_pad, 1, S), jnp.float32),
        ),
        grid=(num_v,),
        in_specs=[
            full((B_pad, H)),                                  # embedded
            full((B_pad, H)),                                  # h_prev
            full((B_pad, S, H)),                               # encoder outputs
            full((3, H, H)),                                   # W_ih^T per gate
            full((3, H, H)),                                   # W_hh^T per gate
            full((3, 1, H)),                                   # b_ih
            full((3, 1, H)),                                   # b_hh
            full((2, H, H)),                                   # W_concat^T split
            full((1, H)),                                      # b_concat
            pl.BlockSpec((H, TV), lambda j: (0, j)),           # W_out^T tile
            pl.BlockSpec((1, TV), lambda j: (0, j)),           # b_out tile
        ],
        out_specs=(
            pl.BlockSpec((B_pad, TV), lambda j: (0, j)),       # logits tile
            full((B_pad, H)),                                  # new hidden
            full((B_pad, 1, S)),                               # attn weights
        ),
        scratch_shapes=[pltpu.VMEM((B_pad, H), pdt)],          # concat_out
        input_output_aliases={1: 1},                           # h_prev <-> hidden out
        compiler_params=pltpu.CompilerParams(
            dimension_semantics=("arbitrary",),
            vmem_limit_bytes=64 * 1024 * 1024,
        ),
    )(x, h0, enc, prep["wih"], prep["whh"], prep["bih"], prep["bhh"],
      prep["wcat"], prep["bcat"], prep["wo"], prep["bo"])

    logits = out[:B, :output_size]
    hidden = hid[:B][None, :, :]       # (1, B, H) -- n_layers = 1
    attn_weights = attn[:B]            # (B, 1, S)
    return logits, hidden, attn_weights


def attn_decoder_rnn_forward(params, input_seq, last_hidden, encoder_outputs,
                             param_dtype=jnp.bfloat16):
    """Convenience wrapper matching the original raw-params API."""
    prep = prepare_params(params, param_dtype)
    return attn_decoder_step(prep, input_seq, last_hidden, encoder_outputs,
                             output_size=params["w_out"].shape[0])


def init_params(key, hidden_size, output_size):
    ks = jax.random.split(key, 9)
    scale = 0.1
    H, V = hidden_size, output_size
    return {
        "embedding": scale * jax.random.normal(ks[0], (V, H), jnp.float32),
        "w_ih":      scale * jax.random.normal(ks[1], (3 * H, H), jnp.float32),
        "w_hh":      scale * jax.random.normal(ks[2], (3 * H, H), jnp.float32),
        "b_ih":      scale * jax.random.normal(ks[3], (3 * H,), jnp.float32),
        "b_hh":      scale * jax.random.normal(ks[4], (3 * H,), jnp.float32),
        "w_concat":  scale * jax.random.normal(ks[5], (H, 2 * H), jnp.float32),
        "b_concat":  scale * jax.random.normal(ks[6], (H,), jnp.float32),
        "w_out":     scale * jax.random.normal(ks[7], (V, H), jnp.float32),
        "b_out":     scale * jax.random.normal(ks[8], (V,), jnp.float32),
    }


if __name__ == "__main__":
    B, H, V, S = 2, 32, 64, 8   # batch, hidden_size, output_size (vocab), enc seq len

    key = jax.random.PRNGKey(0)
    k_par, k_tok, k_hid, k_enc = jax.random.split(key, 4)

    params = init_params(k_par, H, V)
    input_seq = jax.random.randint(k_tok, (B,), 0, V, dtype=jnp.int32)
    last_hidden = jax.random.normal(k_hid, (1, B, H), jnp.float32)
    encoder_outputs = jax.random.normal(k_enc, (S, B, H), jnp.float32)

    prep = prepare_params(params)                      # one-time weight prep
    fwd = jax.jit(functools.partial(attn_decoder_step, prep, output_size=V))
    output, hidden, attn_weights = fwd(input_seq, last_hidden, encoder_outputs)
    jax.block_until_ready((output, hidden, attn_weights))

    assert output.shape == (B, V)
    assert hidden.shape == (1, B, H)
    assert attn_weights.shape == (B, 1, S)
    assert bool(jnp.isfinite(output).all())
    assert bool(jnp.isfinite(attn_weights).all())
    # attention weights must sum to ~1 over the source axis
    assert bool(jnp.allclose(attn_weights.sum(-1), 1.0, atol=1e-2))
    print("KERNEL_OK")
</pallas_src>

<mosaic_0001>
module attributes {stable_mosaic.version = 11 : i64} {
  func.func @_attn_decoder_kernel(%arg0: i32, %arg1: memref<8x32xbf16, #tpu.memory_space<vmem>>, %arg2: memref<8x32xf32, #tpu.memory_space<vmem>>, %arg3: memref<8x8x32xbf16, #tpu.memory_space<vmem>>, %arg4: memref<3x32x32xbf16, #tpu.memory_space<vmem>>, %arg5: memref<3x32x32xbf16, #tpu.memory_space<vmem>>, %arg6: memref<3x1x32xf32, #tpu.memory_space<vmem>>, %arg7: memref<3x1x32xf32, #tpu.memory_space<vmem>>, %arg8: memref<2x32x32xbf16, #tpu.memory_space<vmem>>, %arg9: memref<1x32xf32, #tpu.memory_space<vmem>>, %arg10: memref<32x128xbf16, #tpu.memory_space<vmem>>, %arg11: memref<1x128xf32, #tpu.memory_space<vmem>>, %arg12: memref<8x128xf32, #tpu.memory_space<vmem>>, %arg13: memref<8x32xf32, #tpu.memory_space<vmem>>, %arg14: memref<8x1x8xf32, #tpu.memory_space<vmem>>, %arg15: memref<8x32xbf16, #tpu.memory_space<vmem>>) attributes {dimension_semantics = [#tpu.dimension_semantics<arbitrary>], iteration_bounds = array<i64: 1>, scalar_prefetch = 0 : i64, scratch_operands = 1 : i64, tpu.core_type = #tpu.core_type<tc>, window_params = [{pipeline_mode = #tpu.pipeline_mode<synchronous>, transform_indices = @transform_0, window_bounds = array<i64: 8, 32>}, {pipeline_mode = #tpu.pipeline_mode<synchronous>, transform_indices = @transform_1, window_bounds = array<i64: 8, 32>}, {pipeline_mode = #tpu.pipeline_mode<synchronous>, transform_indices = @transform_2, window_bounds = array<i64: 8, 8, 32>}, {pipeline_mode = #tpu.pipeline_mode<synchronous>, transform_indices = @transform_3, window_bounds = array<i64: 3, 32, 32>}, {pipeline_mode = #tpu.pipeline_mode<synchronous>, transform_indices = @transform_4, window_bounds = array<i64: 3, 32, 32>}, {pipeline_mode = #tpu.pipeline_mode<synchronous>, transform_indices = @transform_5, window_bounds = array<i64: 3, 1, 32>}, {pipeline_mode = #tpu.pipeline_mode<synchronous>, transform_indices = @transform_6, window_bounds = array<i64: 3, 1, 32>}, {pipeline_mode = #tpu.pipeline_mode<synchronous>, transform_indices = @transform_7, window_bounds = array<i64: 2, 32, 32>}, {pipeline_mode = #tpu.pipeline_mode<synchronous>, transform_indices = @transform_8, window_bounds = array<i64: 1, 32>}, {transform_indices = @transform_9, window_bounds = array<i64: 32, 128>}, {transform_indices = @transform_10, window_bounds = array<i64: 1, 128>}, {transform_indices = @transform_11, window_bounds = array<i64: 8, 128>}, {pipeline_mode = #tpu.pipeline_mode<synchronous>, transform_indices = @transform_12, window_bounds = array<i64: 8, 32>}, {pipeline_mode = #tpu.pipeline_mode<synchronous>, transform_indices = @transform_13, window_bounds = array<i64: 8, 1, 8>}]} {
    %c0_i32 = arith.constant 0 : i32
    %0 = arith.cmpi eq, %arg0, %c0_i32 : i32
    %1 = arith.extui %0 : i1 to i32
    %c0_i32_0 = arith.constant 0 : i32
    %2 = arith.cmpi ne, %1, %c0_i32_0 : i32
    scf.if %2 {
      %c0_8 = arith.constant 0 : index
      %c0_9 = arith.constant 0 : index
      %10 = vector.load %arg1[%c0_8, %c0_9] : memref<8x32xbf16, #tpu.memory_space<vmem>>, vector<8x32xbf16>
      %c0_10 = arith.constant 0 : index
      %c0_11 = arith.constant 0 : index
      %11 = vector.load %arg2[%c0_10, %c0_11] : memref<8x32xf32, #tpu.memory_space<vmem>>, vector<8x32xf32>
      %12 = arith.truncf %11 : vector<8x32xf32> to vector<8x32xbf16>
      %c0_12 = arith.constant 0 : index
      %c0_13 = arith.constant 0 : index
      %c0_14 = arith.constant 0 : index
      %13 = vector.load %arg4[%c0_12, %c0_13, %c0_14] : memref<3x32x32xbf16, #tpu.memory_space<vmem>>, vector<1x32x32xbf16>
      %14 = vector.shape_cast %13 : vector<1x32x32xbf16> to vector<32x32xbf16>
      %cst_15 = arith.constant dense<0.000000e+00> : vector<8x32xf32>
      %15 = tpu.matmul %10, %14, %cst_15 {dimension_numbers = #tpu.dot_dimension_numbers<[1], [0], [0], [1], [0, 0, 1, 1], [], []>} : vector<8x32xbf16>, vector<32x32xbf16>, vector<8x32xf32> -> vector<8x32xf32>
      %c0_16 = arith.constant 0 : index
      %c0_17 = arith.constant 0 : index
      %c0_18 = arith.constant 0 : index
      %16 = vector.load %arg6[%c0_16, %c0_17, %c0_18] : memref<3x1x32xf32, #tpu.memory_space<vmem>>, vector<1x1x32xf32>
      %17 = vector.shape_cast %16 : vector<1x1x32xf32> to vector<1x32xf32>
      %18 = vector.broadcast %17 : vector<1x32xf32> to vector<8x32xf32>
      %19 = arith.addf %15, %18 : vector<8x32xf32>
      %c0_19 = arith.constant 0 : index
      %c0_20 = arith.constant 0 : index
      %c0_21 = arith.constant 0 : index
      %20 = vector.load %arg5[%c0_19, %c0_20, %c0_21] : memref<3x32x32xbf16, #tpu.memory_space<vmem>>, vector<1x32x32xbf16>
      %21 = vector.shape_cast %20 : vector<1x32x32xbf16> to vector<32x32xbf16>
      %cst_22 = arith.constant dense<0.000000e+00> : vector<8x32xf32>
      %22 = tpu.matmul %12, %21, %cst_22 {dimension_numbers = #tpu.dot_dimension_numbers<[1], [0], [0], [1], [0, 0, 1, 1], [], []>} : vector<8x32xbf16>, vector<32x32xbf16>, vector<8x32xf32> -> vector<8x32xf32>
      %c0_23 = arith.constant 0 : index
      %c0_24 = arith.constant 0 : index
      %c0_25 = arith.constant 0 : index
      %23 = vector.load %arg7[%c0_23, %c0_24, %c0_25] : memref<3x1x32xf32, #tpu.memory_space<vmem>>, vector<1x1x32xf32>
      %24 = vector.shape_cast %23 : vector<1x1x32xf32> to vector<1x32xf32>
      %25 = vector.broadcast %24 : vector<1x32xf32> to vector<8x32xf32>
      %26 = arith.addf %22, %25 : vector<8x32xf32>
      %c1 = arith.constant 1 : index
      %c0_26 = arith.constant 0 : index
      %c0_27 = arith.constant 0 : index
      %27 = vector.load %arg4[%c1, %c0_26, %c0_27] : memref<3x32x32xbf16, #tpu.memory_space<vmem>>, vector<1x32x32xbf16>
      %28 = vector.shape_cast %27 : vector<1x32x32xbf16> to vector<32x32xbf16>
      %cst_28 = arith.constant dense<0.000000e+00> : vector<8x32xf32>
      %29 = tpu.matmul %10, %28, %cst_28 {dimension_numbers = #tpu.dot_dimension_numbers<[1], [0], [0], [1], [0, 0, 1, 1], [], []>} : vector<8x32xbf16>, vector<32x32xbf16>, vector<8x32xf32> -> vector<8x32xf32>
      %c1_29 = arith.constant 1 : index
      %c0_30 = arith.constant 0 : index
      %c0_31 = arith.constant 0 : index
      %30 = vector.load %arg6[%c1_29, %c0_30, %c0_31] : memref<3x1x32xf32, #tpu.memory_space<vmem>>, vector<1x1x32xf32>
      %31 = vector.shape_cast %30 : vector<1x1x32xf32> to vector<1x32xf32>
      %32 = vector.broadcast %31 : vector<1x32xf32> to vector<8x32xf32>
      %33 = arith.addf %29, %32 : vector<8x32xf32>
      %c1_32 = arith.constant 1 : index
      %c0_33 = arith.constant 0 : index
      %c0_34 = arith.constant 0 : index
      %34 = vector.load %arg5[%c1_32, %c0_33, %c0_34] : memref<3x32x32xbf16, #tpu.memory_space<vmem>>, vector<1x32x32xbf16>
      %35 = vector.shape_cast %34 : vector<1x32x32xbf16> to vector<32x32xbf16>
      %cst_35 = arith.constant dense<0.000000e+00> : vector<8x32xf32>
      %36 = tpu.matmul %12, %35, %cst_35 {dimension_numbers = #tpu.dot_dimension_numbers<[1], [0], [0], [1], [0, 0, 1, 1], [], []>} : vector<8x32xbf16>, vector<32x32xbf16>, vector<8x32xf32> -> vector<8x32xf32>
      %c1_36 = arith.constant 1 : index
      %c0_37 = arith.constant 0 : index
      %c0_38 = arith.constant 0 : index
      %37 = vector.load %arg7[%c1_36, %c0_37, %c0_38] : memref<3x1x32xf32, #tpu.memory_space<vmem>>, vector<1x1x32xf32>
      %38 = vector.shape_cast %37 : vector<1x1x32xf32> to vector<1x32xf32>
      %39 = vector.broadcast %38 : vector<1x32xf32> to vector<8x32xf32>
      %40 = arith.addf %36, %39 : vector<8x32xf32>
      %c2 = arith.constant 2 : index
      %c0_39 = arith.constant 0 : index
      %c0_40 = arith.constant 0 : index
      %41 = vector.load %arg4[%c2, %c0_39, %c0_40] : memref<3x32x32xbf16, #tpu.memory_space<vmem>>, vector<1x32x32xbf16>
      %42 = vector.shape_cast %41 : vector<1x32x32xbf16> to vector<32x32xbf16>
      %cst_41 = arith.constant dense<0.000000e+00> : vector<8x32xf32>
      %43 = tpu.matmul %10, %42, %cst_41 {dimension_numbers = #tpu.dot_dimension_numbers<[1], [0], [0], [1], [0, 0, 1, 1], [], []>} : vector<8x32xbf16>, vector<32x32xbf16>, vector<8x32xf32> -> vector<8x32xf32>
      %c2_42 = arith.constant 2 : index
      %c0_43 = arith.constant 0 : index
      %c0_44 = arith.constant 0 : index
      %44 = vector.load %arg6[%c2_42, %c0_43, %c0_44] : memref<3x1x32xf32, #tpu.memory_space<vmem>>, vector<1x1x32xf32>
      %45 = vector.shape_cast %44 : vector<1x1x32xf32> to vector<1x32xf32>
      %46 = vector.broadcast %45 : vector<1x32xf32> to vector<8x32xf32>
      %47 = arith.addf %43, %46 : vector<8x32xf32>
      %c2_45 = arith.constant 2 : index
      %c0_46 = arith.constant 0 : index
      %c0_47 = arith.constant 0 : index
      %48 = vector.load %arg5[%c2_45, %c0_46, %c0_47] : memref<3x32x32xbf16, #tpu.memory_space<vmem>>, vector<1x32x32xbf16>
      %49 = vector.shape_cast %48 : vector<1x32x32xbf16> to vector<32x32xbf16>
      %cst_48 = arith.constant dense<0.000000e+00> : vector<8x32xf32>
      %50 = tpu.matmul %12, %49, %cst_48 {dimension_numbers = #tpu.dot_dimension_numbers<[1], [0], [0], [1], [0, 0, 1, 1], [], []>} : vector<8x32xbf16>, vector<32x32xbf16>, vector<8x32xf32> -> vector<8x32xf32>
      %c2_49 = arith.constant 2 : index
      %c0_50 = arith.constant 0 : index
      %c0_51 = arith.constant 0 : index
      %51 = vector.load %arg7[%c2_49, %c0_50, %c0_51] : memref<3x1x32xf32, #tpu.memory_space<vmem>>, vector<1x1x32xf32>
      %52 = vector.shape_cast %51 : vector<1x1x32xf32> to vector<1x32xf32>
      %53 = vector.broadcast %52 : vector<1x32xf32> to vector<8x32xf32>
      %54 = arith.addf %50, %53 : vector<8x32xf32>
      %55 = arith.addf %19, %26 : vector<8x32xf32>
      %56 = arith.negf %55 : vector<8x32xf32>
      %57 = math.exp %56 : vector<8x32xf32>
      %cst_52 = arith.constant 1.000000e+00 : f32
      %58 = vector.broadcast %cst_52 : f32 to vector<8x32xf32>
      %59 = arith.addf %58, %57 : vector<8x32xf32>
      %60 = arith.divf %58, %59 : vector<8x32xf32>
      %61 = arith.addf %33, %40 : vector<8x32xf32>
      %62 = arith.negf %61 : vector<8x32xf32>
      %63 = math.exp %62 : vector<8x32xf32>
      %cst_53 = arith.constant 1.000000e+00 : f32
      %64 = vector.broadcast %cst_53 : f32 to vector<8x32xf32>
      %65 = arith.addf %64, %63 : vector<8x32xf32>
      %66 = arith.divf %64, %65 : vector<8x32xf32>
      %67 = arith.mulf %60, %54 : vector<8x32xf32>
      %68 = arith.addf %47, %67 : vector<8x32xf32>
      %69 = math.tanh %68 : vector<8x32xf32>
      %cst_54 = arith.constant 1.000000e+00 : f32
      %70 = vector.broadcast %cst_54 : f32 to vector<8x32xf32>
      %71 = arith.subf %70, %66 : vector<8x32xf32>
      %72 = arith.mulf %71, %69 : vector<8x32xf32>
      %73 = arith.mulf %66, %11 : vector<8x32xf32>
      %74 = arith.addf %72, %73 : vector<8x32xf32>
      %c0_55 = arith.constant 0 : index
      %c0_56 = arith.constant 0 : index
      %75 = vector.load %arg13[%c0_55, %c0_56] : memref<8x32xf32, #tpu.memory_space<vmem>>, vector<8x32xf32>
      tpu.vector_store %arg13[%c0_55, %c0_56], %74 {strides = array<i32>} : memref<8x32xf32, #tpu.memory_space<vmem>>, vector<8x32xf32>,
      %76 = arith.truncf %74 : vector<8x32xf32> to vector<8x32xbf16>
      %c0_57 = arith.constant 0 : index
      %c0_58 = arith.constant 0 : index
      %c0_59 = arith.constant 0 : index
      %77 = vector.load %arg3[%c0_57, %c0_58, %c0_59] : memref<8x8x32xbf16, #tpu.memory_space<vmem>>, vector<8x8x32xbf16>
      %78 = vector.shape_cast %76 : vector<8x32xbf16> to vector<8x1x32xbf16>
      "tpu.trace_start"() <{level = 10 : i32, message = "bqh,bsh->bqs"}> : () -> ()
      %cst_60 = arith.constant dense<0.000000e+00> : vector<8x1x8xf32>
      %79 = tpu.matmul %78, %77, %cst_60 {dimension_numbers = #tpu.dot_dimension_numbers<[2], [2], [1], [1], [0, 0, 0, 1, 1, 1], [0], [0]>} : vector<8x1x32xbf16>, vector<8x8x32xbf16>, vector<8x1x8xf32> -> vector<8x1x8xf32>
      "tpu.trace_stop"() : () -> ()
      %cst_61 = arith.constant dense<0xFF800000> : vector<8x1xf32>
      %80 = vector.multi_reduction <maximumf>, %79, %cst_61 [2] : vector<8x1x8xf32> to vector<8x1xf32>
      %81 = vector.shape_cast %80 : vector<8x1xf32> to vector<8x1x1xf32>
      %82 = vector.broadcast %81 : vector<8x1x1xf32> to vector<8x1x8xf32>
      %83 = arith.subf %79, %82 : vector<8x1x8xf32>
      %84 = math.exp %83 : vector<8x1x8xf32>
      %cst_62 = arith.constant dense<0.000000e+00> : vector<8x1xf32>
      %85 = vector.multi_reduction <add>, %84, %cst_62 [2] : vector<8x1x8xf32> to vector<8x1xf32>
      %86 = vector.shape_cast %85 : vector<8x1xf32> to vector<8x1x1xf32>
      %87 = tpu.reciprocal %86 {approx = true} : vector<8x1x1xf32> -> vector<8x1x1xf32>
      %88 = vector.broadcast %87 : vector<8x1x1xf32> to vector<8x1x8xf32>
      %89 = arith.mulf %84, %88 : vector<8x1x8xf32>
      %c0_63 = arith.constant 0 : index
      %c0_64 = arith.constant 0 : index
      %c0_65 = arith.constant 0 : index
      %90 = vector.load %arg14[%c0_63, %c0_64, %c0_65] : memref<8x1x8xf32, #tpu.memory_space<vmem>>, vector<8x1x8xf32>
      tpu.vector_store %arg14[%c0_63, %c0_64, %c0_65], %89 {strides = array<i32>} : memref<8x1x8xf32, #tpu.memory_space<vmem>>, vector<8x1x8xf32>,
      %91 = arith.truncf %89 : vector<8x1x8xf32> to vector<8x1x8xbf16>
      "tpu.trace_start"() <{level = 10 : i32, message = "bqs,bsh->bqh"}> : () -> ()
      %cst_66 = arith.constant dense<0.000000e+00> : vector<8x1x32xf32>
      %92 = tpu.matmul %91, %77, %cst_66 {dimension_numbers = #tpu.dot_dimension_numbers<[2], [1], [1], [2], [0, 0, 0, 1, 1, 2], [0], [0]>} : vector<8x1x8xbf16>, vector<8x8x32xbf16>, vector<8x1x32xf32> -> vector<8x1x32xf32>
      "tpu.trace_stop"() : () -> ()
      %93 = vector.shape_cast %92 : vector<8x1x32xf32> to vector<8x32xf32>
      %94 = arith.truncf %93 : vector<8x32xf32> to vector<8x32xbf16>
      %c0_67 = arith.constant 0 : index
      %c0_68 = arith.constant 0 : index
      %c0_69 = arith.constant 0 : index
      %95 = vector.load %arg8[%c0_67, %c0_68, %c0_69] : memref<2x32x32xbf16, #tpu.memory_space<vmem>>, vector<1x32x32xbf16>
      %96 = vector.shape_cast %95 : vector<1x32x32xbf16> to vector<32x32xbf16>
      %cst_70 = arith.constant dense<0.000000e+00> : vector<8x32xf32>
      %97 = tpu.matmul %76, %96, %cst_70 {dimension_numbers = #tpu.dot_dimension_numbers<[1], [0], [0], [1], [0, 0, 1, 1], [], []>} : vector<8x32xbf16>, vector<32x32xbf16>, vector<8x32xf32> -> vector<8x32xf32>
      %c1_71 = arith.constant 1 : index
      %c0_72 = arith.constant 0 : index
      %c0_73 = arith.constant 0 : index
      %98 = vector.load %arg8[%c1_71, %c0_72, %c0_73] : memref<2x32x32xbf16, #tpu.memory_space<vmem>>, vector<1x32x32xbf16>
      %99 = vector.shape_cast %98 : vector<1x32x32xbf16> to vector<32x32xbf16>
      %cst_74 = arith.constant dense<0.000000e+00> : vector<8x32xf32>
      %100 = tpu.matmul %94, %99, %cst_74 {dimension_numbers = #tpu.dot_dimension_numbers<[1], [0], [0], [1], [0, 0, 1, 1], [], []>} : vector<8x32xbf16>, vector<32x32xbf16>, vector<8x32xf32> -> vector<8x32xf32>
      %101 = arith.addf %97, %100 : vector<8x32xf32>
      %c0_75 = arith.constant 0 : index
      %c0_76 = arith.constant 0 : index
      %102 = vector.load %arg9[%c0_75, %c0_76] : memref<1x32xf32, #tpu.memory_space<vmem>>, vector<1x32xf32>
      %103 = vector.broadcast %102 : vector<1x32xf32> to vector<8x32xf32>
      %104 = arith.addf %101, %103 : vector<8x32xf32>
      %105 = math.tanh %104 : vector<8x32xf32>
      %106 = arith.truncf %105 : vector<8x32xf32> to vector<8x32xbf16>
      %c0_77 = arith.constant 0 : index
      %c0_78 = arith.constant 0 : index
      %107 = vector.load %arg15[%c0_77, %c0_78] : memref<8x32xbf16, #tpu.memory_space<vmem>>, vector<8x32xbf16>
      tpu.vector_store %arg15[%c0_77, %c0_78], %106 {strides = array<i32>} : memref<8x32xbf16, #tpu.memory_space<vmem>>, vector<8x32xbf16>,
    } else {
    }
    %c0 = arith.constant 0 : index
    %c0_1 = arith.constant 0 : index
    %3 = vector.load %arg15[%c0, %c0_1] : memref<8x32xbf16, #tpu.memory_space<vmem>>, vector<8x32xbf16>
    %c0_2 = arith.constant 0 : index
    %c0_3 = arith.constant 0 : index
    %4 = vector.load %arg10[%c0_2, %c0_3] : memref<32x128xbf16, #tpu.memory_space<vmem>>, vector<32x128xbf16>
    %cst = arith.constant dense<0.000000e+00> : vector<8x128xf32>
    %5 = tpu.matmul %3, %4, %cst {dimension_numbers = #tpu.dot_dimension_numbers<[1], [0], [0], [1], [0, 0, 1, 1], [], []>} : vector<8x32xbf16>, vector<32x128xbf16>, vector<8x128xf32> -> vector<8x128xf32>
    %c0_4 = arith.constant 0 : index
    %c0_5 = arith.constant 0 : index
    %6 = vector.load %arg11[%c0_4, %c0_5] : memref<1x128xf32, #tpu.memory_space<vmem>>, vector<1x128xf32>
    %7 = vector.broadcast %6 : vector<1x128xf32> to vector<8x128xf32>
    %8 = arith.addf %5, %7 : vector<8x128xf32>
    %c0_6 = arith.constant 0 : index
    %c0_7 = arith.constant 0 : index
    %9 = vector.load %arg12[%c0_6, %c0_7] : memref<8x128xf32, #tpu.memory_space<vmem>>, vector<8x128xf32>
    tpu.vector_store %arg12[%c0_6, %c0_7], %8 {strides = array<i32>} : memref<8x128xf32, #tpu.memory_space<vmem>>, vector<8x128xf32>,
    return
  }
  func.func @transform_0(%arg0: i32) -> (i32, i32) {
    %c0_i32 = arith.constant 0 : i32
    %c0_i32_0 = arith.constant 0 : i32
    %c0_i32_1 = arith.constant 0 : i32
    return %c0_i32, %c0_i32_0 : i32, i32
  }
  func.func @transform_1(%arg0: i32) -> (i32, i32) {
    %c0_i32 = arith.constant 0 : i32
    %c0_i32_0 = arith.constant 0 : i32
    %c0_i32_1 = arith.constant 0 : i32
    return %c0_i32, %c0_i32_0 : i32, i32
  }
  func.func @transform_2(%arg0: i32) -> (i32, i32, i32) {
    %c0_i32 = arith.constant 0 : i32
    %c0_i32_0 = arith.constant 0 : i32
    %c0_i32_1 = arith.constant 0 : i32
    %c0_i32_2 = arith.constant 0 : i32
    return %c0_i32, %c0_i32_0, %c0_i32_1 : i32, i32, i32
  }
  func.func @transform_3(%arg0: i32) -> (i32, i32, i32) {
    %c0_i32 = arith.constant 0 : i32
    %c0_i32_0 = arith.constant 0 : i32
    %c0_i32_1 = arith.constant 0 : i32
    %c0_i32_2 = arith.constant 0 : i32
    return %c0_i32, %c0_i32_0, %c0_i32_1 : i32, i32, i32
  }
  func.func @transform_4(%arg0: i32) -> (i32, i32, i32) {
    %c0_i32 = arith.constant 0 : i32
    %c0_i32_0 = arith.constant 0 : i32
    %c0_i32_1 = arith.constant 0 : i32
    %c0_i32_2 = arith.constant 0 : i32
    return %c0_i32, %c0_i32_0, %c0_i32_1 : i32, i32, i32
  }
  func.func @transform_5(%arg0: i32) -> (i32, i32, i32) {
    %c0_i32 = arith.constant 0 : i32
    %c0_i32_0 = arith.constant 0 : i32
    %c0_i32_1 = arith.constant 0 : i32
    %c0_i32_2 = arith.constant 0 : i32
    return %c0_i32, %c0_i32_0, %c0_i32_1 : i32, i32, i32
  }
  func.func @transform_6(%arg0: i32) -> (i32, i32, i32) {
    %c0_i32 = arith.constant 0 : i32
    %c0_i32_0 = arith.constant 0 : i32
    %c0_i32_1 = arith.constant 0 : i32
    %c0_i32_2 = arith.constant 0 : i32
    return %c0_i32, %c0_i32_0, %c0_i32_1 : i32, i32, i32
  }
  func.func @transform_7(%arg0: i32) -> (i32, i32, i32) {
    %c0_i32 = arith.constant 0 : i32
    %c0_i32_0 = arith.constant 0 : i32
    %c0_i32_1 = arith.constant 0 : i32
    %c0_i32_2 = arith.constant 0 : i32
    return %c0_i32, %c0_i32_0, %c0_i32_1 : i32, i32, i32
  }
  func.func @transform_8(%arg0: i32) -> (i32, i32) {
    %c0_i32 = arith.constant 0 : i32
    %c0_i32_0 = arith.constant 0 : i32
    %c0_i32_1 = arith.constant 0 : i32
    return %c0_i32, %c0_i32_0 : i32, i32
  }
  func.func @transform_9(%arg0: i32) -> (i32, i32) {
    %c0_i32 = arith.constant 0 : i32
    %c0_i32_0 = arith.constant 0 : i32
    return %c0_i32, %arg0 : i32, i32
  }
  func.func @transform_10(%arg0: i32) -> (i32, i32) {
    %c0_i32 = arith.constant 0 : i32
    %c0_i32_0 = arith.constant 0 : i32
    return %c0_i32, %arg0 : i32, i32
  }
  func.func @transform_11(%arg0: i32) -> (i32, i32) {
    %c0_i32 = arith.constant 0 : i32
    %c0_i32_0 = arith.constant 0 : i32
    return %c0_i32, %arg0 : i32, i32
  }
  func.func @transform_12(%arg0: i32) -> (i32, i32) {
    %c0_i32 = arith.constant 0 : i32
    %c0_i32_0 = arith.constant 0 : i32
    %c0_i32_1 = arith.constant 0 : i32
    return %c0_i32, %c0_i32_0 : i32, i32
  }
  func.func @transform_13(%arg0: i32) -> (i32, i32, i32) {
    %c0_i32 = arith.constant 0 : i32
    %c0_i32_0 = arith.constant 0 : i32
    %c0_i32_1 = arith.constant 0 : i32
    %c0_i32_2 = arith.constant 0 : i32
    return %c0_i32, %c0_i32_0, %c0_i32_1 : i32, i32, i32
  }
}

</mosaic_0001>

<llo_original>
// kernel: attn_decoder_step.1
$region0: #{attn_decoder_step.1}
  #allocation0 [shape = 'u32[]', space=smem, size = 0x4, offset = 0x4, fixed_abs, tag = 'smem constant byte address 0x4 - core index']
  #allocation1 [shape = 'u32[144,128]{1,0:T(1,128)}', space=vmem, size = 0x12000, scoped, tag = 'internal scratch']
  #allocation2 [shape = 'bf16[8,32]{1,0:T(8,128)(2,1)}', space=vmem, size = 0x800, scoped, tag = 'scratch operand']
  %s0 = inlined_call_operand.vmem [shape: bf16[8,32], index: 0, kind: input, shape index: {}]
  %s1 = inlined_call_operand.vmem [shape: f32[8,32], index: 1, kind: input, shape index: {}, may-alias: {1,12}]
  %s2 = inlined_call_operand.vmem [shape: bf16[8,8,32], index: 2, kind: input, shape index: {}]
  %s3 = inlined_call_operand.vmem [shape: bf16[3,32,32], index: 3, kind: input, shape index: {}]
  %s4 = inlined_call_operand.vmem [shape: bf16[3,32,32], index: 4, kind: input, shape index: {}]
  %s5 = inlined_call_operand.vmem [shape: f32[3,1,32], index: 5, kind: input, shape index: {}]
  %s6 = inlined_call_operand.vmem [shape: f32[3,1,32], index: 6, kind: input, shape index: {}]
  %s7 = inlined_call_operand.hbm [shape: bf16[2,32,32], index: 7, kind: input, shape index: {}]
  %s8 = inlined_call_operand.vmem [shape: f32[1,32], index: 8, kind: input, shape index: {}]
  %s9 = inlined_call_operand.vmem [shape: bf16[32,128], index: 9, kind: input, shape index: {}]
  %s10 = inlined_call_operand.vmem [shape: f32[1,128], index: 10, kind: input, shape index: {}]
  %s11 = inlined_call_operand.vmem [shape: f32[8,128], index: 11, kind: output, shape index: {0}]
  %s12 = inlined_call_operand.vmem [shape: f32[8,32], index: 12, kind: output, shape index: {1}, may-alias: {1,12}]
  %s13 = inlined_call_operand.vmem [shape: f32[8,1,8], index: 13, kind: output, shape index: {2}]
  %14 = xla_tuple %s11, %s12, %s13
  %s15 = sld [smem:[#allocation0]]
  $region78: #{attn_decoder_step.1} parent=0
    _
  %s17 = ssub.s32 1, %s15
  %s18 = scalar_select 0, %s17, %s15
  $region1: #{attn_decoder_step.1} parent=0
    #allocation3 [shape = 'u8[16384]{0}', space=vmem, size = 0x4000, scoped, tag = 'input window, operand 7, single buffered']
    #allocation4 [shape = 's32[1]{0}', space=sflag, size = 0x4, scoped, tag = 'scoped memory for attn_decoder_step.1']
    %19 = vsyncpa [#allocation4], 0
    // Predicated region
    $region2: #{attn_decoder_step.1} parent=1 // pred_check
      _
    $region3: #{attn_decoder_step.1} parent=1 // pred_check_branch
      %21 = sbr.rel (0) target = $region5
    $region4: #{attn_decoder_step.1} parent=1 // pred_region
      _
    $region5: #{attn_decoder_step.1} parent=1 // pred_fallthru
      _
    // Predicated region
    $region6: #{attn_decoder_step.1} parent=1 // pred_check
      _
    $region7: #{attn_decoder_step.1} parent=1 // pred_check_branch
      %23 = sbr.rel (0) target = $region9
    $region8: #{attn_decoder_step.1} parent=1 // pred_region
      _
    $region9: #{attn_decoder_step.1} parent=1 // pred_fallthru
      _
    // Predicated region
    $region10: #{attn_decoder_step.1} parent=1 // pred_check
      _
    $region11: #{attn_decoder_step.1} parent=1 // pred_check_branch
      %25 = sbr.rel (0) target = $region13
    $region12: #{attn_decoder_step.1} parent=1 // pred_region
      _
    $region13: #{attn_decoder_step.1} parent=1 // pred_fallthru
      _
    // Predicated region
    $region14: #{attn_decoder_step.1} parent=1 // pred_check
      _
    $region15: #{attn_decoder_step.1} parent=1 // pred_check_branch
      %27 = sbr.rel (0) target = $region17
    $region16: #{attn_decoder_step.1} parent=1 // pred_region
      _
    $region17: #{attn_decoder_step.1} parent=1 // pred_fallthru
      _
    // Predicated region
    $region18: #{attn_decoder_step.1} parent=1 // pred_check
      _
    $region19: #{attn_decoder_step.1} parent=1 // pred_check_branch
      %29 = sbr.rel (0) target = $region21
    $region20: #{attn_decoder_step.1} parent=1 // pred_region
      _
    $region21: #{attn_decoder_step.1} parent=1 // pred_fallthru
      _
    // Predicated region
    $region22: #{attn_decoder_step.1} parent=1 // pred_check
      _
    $region23: #{attn_decoder_step.1} parent=1 // pred_check_branch
      %31 = sbr.rel (0) target = $region25
    $region24: #{attn_decoder_step.1} parent=1 // pred_region
      _
    $region25: #{attn_decoder_step.1} parent=1 // pred_fallthru
      _
    // Predicated region
    $region26: #{attn_decoder_step.1} parent=1 // pred_check
      _
    $region27: #{attn_decoder_step.1} parent=1 // pred_check_branch
      %33 = sbr.rel (0) target = $region29
    $region28: #{attn_decoder_step.1} parent=1 // pred_region
      _
    $region29: #{attn_decoder_step.1} parent=1 // pred_fallthru
      _
    // Predicated region
    $region30: #{attn_decoder_step.1} parent=1 // pred_check
      _
    $region31: #{attn_decoder_step.1} parent=1 // pred_check_branch
      %35 = sbr.rel (0) target = $region33
    $region32: #{attn_decoder_step.1} parent=1 // pred_region
      %s37 = ssub.s32 512, 512
      %38 = vsyncadd [#allocation4], %s37
      %s39 = sshll.u32 [#allocation3], 4
      %s40 = int_to_ptr.vmem [resolvable:$true] %s39
      %45 = dma.hbm_to_vmem [thread:$0]  %s7, 512, %s40, [#allocation4], 64, 64, 4
    $region33: #{attn_decoder_step.1} parent=1 // pred_fallthru
      _
    // Predicated region
    $region34: #{attn_decoder_step.1} parent=1 // pred_check
      _
    $region35: #{attn_decoder_step.1} parent=1 // pred_check_branch
      %47 = sbr.rel (0) target = $region37
    $region36: #{attn_decoder_step.1} parent=1 // pred_region
      _
    $region37: #{attn_decoder_step.1} parent=1 // pred_fallthru
      _
    // Predicated region
    $region38: #{attn_decoder_step.1} parent=1 // pred_check
      _
    $region39: #{attn_decoder_step.1} parent=1 // pred_check_branch
      %49 = sbr.rel (0) target = $region41
    $region40: #{attn_decoder_step.1} parent=1 // pred_region
      _
    $region41: #{attn_decoder_step.1} parent=1 // pred_fallthru
      _
    // Predicated region
    $region42: #{attn_decoder_step.1} parent=1 // pred_check
      _
    $region43: #{attn_decoder_step.1} parent=1 // pred_check_branch
      %51 = sbr.rel (0) target = $region45
    $region44: #{attn_decoder_step.1} parent=1 // pred_region
      _
    $region45: #{attn_decoder_step.1} parent=1 // pred_fallthru
      _
    // Predicated region
    $region46: #{attn_decoder_step.1} parent=1 // pred_check
      _
    $region47: #{attn_decoder_step.1} parent=1 // pred_check_branch
      %53 = sbr.rel (0) target = $region49
    $region48: #{attn_decoder_step.1} parent=1 // pred_region
      %54 = dma.done [#allocation4], 512
    $region49: #{attn_decoder_step.1} parent=1 // pred_fallthru
      _
    %p56 = scmp.eq.s32.totalorder 0, 0
    // Predicated region
    $region50: #{attn_decoder_step.1} parent=1 // pred_check
      %p57 = pneg %p56
    $region51: #{attn_decoder_step.1} parent=1 // pred_check_branch
      %59 = sbr.rel (%p57) target = $region53
    $region52: #{attn_decoder_step.1} parent=1 // pred_region
      %v60 = vld [vmem:[%s0] sm:$0xf]
      %v61 = vld [vmem:[%s1] sm:$0xff]
      %v62 = vpack.c.bf16 %v61, %v61
      %v63 = vld [vmem:[%s3] sm:$0xf]
      %v64 = vld [vmem:[%s3 + $0x4] sm:$0xf]
      %v65 = vld [vmem:[%s3 + $0x8] sm:$0xf]
      %v66 = vld [vmem:[%s3 + $0xc] sm:$0xf]
      %v67 = vld [vmem:[%s5] sm:$0x1]
      %v69 = vlaneseq
      %v70 = vshrl.u32 %v69, 7
      %v71 = vsub.s32 0, %v70
      %v72 = vrot.slane %v67, %v71
      %v78 = vunpack.c.l.b16 %v63
      %v79 = vunpack.c.l.b16 %v64
      %v80 = vunpack.c.l.b16 %v65
      %v81 = vunpack.c.l.b16 %v66
      %v82 = vpack.c.b16 %v79, %v78
      %v83 = vpack.c.b16 %v81, %v80
      %vm86 = vcmask 261120
      %v88 = vsel %vm86, %v60, 0
      %90 = vmatprep.subr.bf16.mxu0 0
      %91 = vmatpush1.bf16.msra.mxu0 0
      %92 = vmatprep.subr.bf16.mxu0 0
      %93 = vmatpush1.bf16.msra.mxu0 0
      %94 = vmatprep.subr.bf16.mxu0 0
      %95 = vmatpush1.bf16.msra.mxu0 0
      %96 = vmatprep.subr.bf16.mxu0 0
      %97 = vmatpush1.bf16.msra.mxu0 0
      %98 = vmatprep.subr.bf16.mxu0 0
      %99 = vmatpush1.bf16.msra.mxu0 0
      %100 = vmatprep.subr.bf16.mxu0 0
      %101 = vmatpush1.bf16.msra.mxu0 0
      %102 = vmatprep.subr.bf16.mxu0 0
      %103 = vmatpush1.bf16.msra.mxu0 %v83
      %104 = vmatprep.subr.bf16.mxu0 0
      %105 = vmatpush1.bf16.msra.mxu0 %v82
      %106 = vmatprep.subr.bf16.mxu0 0
      %107 = vmatpush2.bf16.msra.mxu0 0
      %108 = vmatprep.subr.bf16.mxu0 0
      %109 = vmatpush2.bf16.msra.mxu0 0
      %110 = vmatprep.subr.bf16.mxu0 0
      %111 = vmatpush2.bf16.msra.mxu0 0
      %112 = vmatprep.subr.bf16.mxu0 0
      %113 = vmatpush2.bf16.msra.mxu0 0
      %114 = vmatprep.subr.bf16.mxu0 0
      %115 = vmatpush2.bf16.msra.mxu0 0
      %116 = vmatprep.subr.bf16.mxu0 0
      %117 = vmatpush2.bf16.msra.mxu0 0
      %118 = vmatprep.subr.bf16.mxu0 0
      %119 = vmatpush2.bf16.msra.mxu0 0
      %120 = vmatprep.subr.bf16.mxu0 0
      %121 = vmatpush2.bf16.msra.mxu0 0
      %122 = vmatprep.mubr.bf16.mxu0 0
      %123 = vmatmul.mubr.bf16.gmra.mxu0 %v88
      %v124 = vpop.f32.mrf.mxu0
      %v125 = vadd.f32 %v72, %v124
      %v126 = vpop.f32.mrf.mxu0
      %v127 = vpop.f32.mrf.mxu0
      %v128 = vpop.f32.mrf.mxu0
      %129 = vdwg.mxu0
      %v130 = vld [vmem:[%s4] sm:$0xf]
      %v131 = vld [vmem:[%s4 + $0x4] sm:$0xf]
      %v132 = vld [vmem:[%s4 + $0x8] sm:$0xf]
      %v133 = vld [vmem:[%s4 + $0xc] sm:$0xf]
      %v134 = vld [vmem:[%s6] sm:$0x1]
      %v136 = vlaneseq
      %v137 = vshrl.u32 %v136, 7
      %v138 = vsub.s32 0, %v137
      %v139 = vrot.slane %v134, %v138
      %v145 = vunpack.c.l.b16 %v130
      %v146 = vunpack.c.l.b16 %v131
      %v147 = vunpack.c.l.b16 %v132
      %v148 = vunpack.c.l.b16 %v133
      %v149 = vpack.c.b16 %v146, %v145
      %v150 = vpack.c.b16 %v148, %v147
      %v154 = vsel %vm86, %v62, 0
      %156 = vmatprep.subr.bf16.mxu0 0
      %157 = vmatpush1.bf16.msra.mxu0 0
      %158 = vmatprep.subr.bf16.mxu0 0
      %159 = vmatpush1.bf16.msra.mxu0 0
      %160 = vmatprep.subr.bf16.mxu0 0
      %161 = vmatpush1.bf16.msra.mxu0 0
      %162 = vmatprep.subr.bf16.mxu0 0
      %163 = vmatpush1.bf16.msra.mxu0 0
      %164 = vmatprep.subr.bf16.mxu0 0
      %165 = vmatpush1.bf16.msra.mxu0 0
      %166 = vmatprep.subr.bf16.mxu0 0
      %167 = vmatpush1.bf16.msra.mxu0 0
      %168 = vmatprep.subr.bf16.mxu0 0
      %169 = vmatpush1.bf16.msra.mxu0 %v150
      %170 = vmatprep.subr.bf16.mxu0 0
      %171 = vmatpush1.bf16.msra.mxu0 %v149
      %172 = vmatprep.subr.bf16.mxu0 0
      %173 = vmatpush2.bf16.msra.mxu0 0
      %174 = vmatprep.subr.bf16.mxu0 0
      %175 = vmatpush2.bf16.msra.mxu0 0
      %176 = vmatprep.subr.bf16.mxu0 0
      %177 = vmatpush2.bf16.msra.mxu0 0
      %178 = vmatprep.subr.bf16.mxu0 0
      %179 = vmatpush2.bf16.msra.mxu0 0
      %180 = vmatprep.subr.bf16.mxu0 0
      %181 = vmatpush2.bf16.msra.mxu0 0
      %182 = vmatprep.subr.bf16.mxu0 0
      %183 = vmatpush2.bf16.msra.mxu0 0
      %184 = vmatprep.subr.bf16.mxu0 0
      %185 = vmatpush2.bf16.msra.mxu0 0
      %186 = vmatprep.subr.bf16.mxu0 0
      %187 = vmatpush2.bf16.msra.mxu0 0
      %188 = vmatprep.mubr.bf16.mxu0 0
      %189 = vmatmul.mubr.bf16.gmra.mxu0 %v154
      %v190 = vpop.f32.mrf.mxu0
      %v191 = vadd.f32 %v139, %v190
      %v192 = vpop.f32.mrf.mxu0
      %v193 = vpop.f32.mrf.mxu0
      %v194 = vpop.f32.mrf.mxu0
      %195 = vdwg.mxu0
      %s196 = scalar_lea.vmem %s3, 16
      %v197 = vld [vmem:[%s196] sm:$0xf]
      %v198 = vld [vmem:[%s196 + $0x4] sm:$0xf]
      %v199 = vld [vmem:[%s196 + $0x8] sm:$0xf]
      %v200 = vld [vmem:[%s196 + $0xc] sm:$0xf]
      %s201 = scalar_lea.vmem %s5, 1
      %v202 = vld [vmem:[%s201] sm:$0x1]
      %v204 = vlaneseq
      %v205 = vshrl.u32 %v204, 7
      %v206 = vsub.s32 0, %v205
      %v207 = vrot.slane %v202, %v206
      %v213 = vunpack.c.l.b16 %v197
      %v214 = vunpack.c.l.b16 %v198
      %v215 = vunpack.c.l.b16 %v199
      %v216 = vunpack.c.l.b16 %v200
      %v217 = vpack.c.b16 %v214, %v213
      %v218 = vpack.c.b16 %v216, %v215
      %221 = vmatprep.subr.bf16.mxu0 0
      %222 = vmatpush1.bf16.msra.mxu0 0
      %223 = vmatprep.subr.bf16.mxu0 0
      %224 = vmatpush1.bf16.msra.mxu0 0
      %225 = vmatprep.subr.bf16.mxu0 0
      %226 = vmatpush1.bf16.msra.mxu0 0
      %227 = vmatprep.subr.bf16.mxu0 0
      %228 = vmatpush1.bf16.msra.mxu0 0
      %229 = vmatprep.subr.bf16.mxu0 0
      %230 = vmatpush1.bf16.msra.mxu0 0
      %231 = vmatprep.subr.bf16.mxu0 0
      %232 = vmatpush1.bf16.msra.mxu0 0
      %233 = vmatprep.subr.bf16.mxu0 0
      %234 = vmatpush1.bf16.msra.mxu0 %v218
      %235 = vmatprep.subr.bf16.mxu0 0
      %236 = vmatpush1.bf16.msra.mxu0 %v217
      %237 = vmatprep.subr.bf16.mxu0 0
      %238 = vmatpush2.bf16.msra.mxu0 0
      %239 = vmatprep.subr.bf16.mxu0 0
      %240 = vmatpush2.bf16.msra.mxu0 0
      %241 = vmatprep.subr.bf16.mxu0 0
      %242 = vmatpush2.bf16.msra.mxu0 0
      %243 = vmatprep.subr.bf16.mxu0 0
      %244 = vmatpush2.bf16.msra.mxu0 0
      %245 = vmatprep.subr.bf16.mxu0 0
      %246 = vmatpush2.bf16.msra.mxu0 0
      %247 = vmatprep.subr.bf16.mxu0 0
      %248 = vmatpush2.bf16.msra.mxu0 0
      %249 = vmatprep.subr.bf16.mxu0 0
      %250 = vmatpush2.bf16.msra.mxu0 0
      %251 = vmatprep.subr.bf16.mxu0 0
      %252 = vmatpush2.bf16.msra.mxu0 0
      %253 = vmatprep.mubr.bf16.mxu0 0
      %254 = vmatmul.mubr.bf16.gmra.mxu0 %v88
      %v255 = vpop.f32.mrf.mxu0
      %v256 = vadd.f32 %v207, %v255
      %v257 = vpop.f32.mrf.mxu0
      %v258 = vpop.f32.mrf.mxu0
      %v259 = vpop.f32.mrf.mxu0
      %260 = vdwg.mxu0
      %s261 = scalar_lea.vmem %s4, 16
      %v262 = vld [vmem:[%s261] sm:$0xf]
      %v263 = vld [vmem:[%s261 + $0x4] sm:$0xf]
      %v264 = vld [vmem:[%s261 + $0x8] sm:$0xf]
      %v265 = vld [vmem:[%s261 + $0xc] sm:$0xf]
      %s266 = scalar_lea.vmem %s6, 1
      %v267 = vld [vmem:[%s266] sm:$0x1]
      %v269 = vlaneseq
      %v270 = vshrl.u32 %v269, 7
      %v271 = vsub.s32 0, %v270
      %v272 = vrot.slane %v267, %v271
      %v278 = vunpack.c.l.b16 %v262
      %v279 = vunpack.c.l.b16 %v263
      %v280 = vunpack.c.l.b16 %v264
      %v281 = vunpack.c.l.b16 %v265
      %v282 = vpack.c.b16 %v279, %v278
      %v283 = vpack.c.b16 %v281, %v280
      %286 = vmatprep.subr.bf16.mxu0 0
      %287 = vmatpush1.bf16.msra.mxu0 0
      %288 = vmatprep.subr.bf16.mxu0 0
      %289 = vmatpush1.bf16.msra.mxu0 0
      %290 = vmatprep.subr.bf16.mxu0 0
      %291 = vmatpush1.bf16.msra.mxu0 0
      %292 = vmatprep.subr.bf16.mxu0 0
      %293 = vmatpush1.bf16.msra.mxu0 0
      %294 = vmatprep.subr.bf16.mxu0 0
      %295 = vmatpush1.bf16.msra.mxu0 0
      %296 = vmatprep.subr.bf16.mxu0 0
      %297 = vmatpush1.bf16.msra.mxu0 0
      %298 = vmatprep.subr.bf16.mxu0 0
      %299 = vmatpush1.bf16.msra.mxu0 %v283
      %300 = vmatprep.subr.bf16.mxu0 0
      %301 = vmatpush1.bf16.msra.mxu0 %v282
      %302 = vmatprep.subr.bf16.mxu0 0
      %303 = vmatpush2.bf16.msra.mxu0 0
      %304 = vmatprep.subr.bf16.mxu0 0
      %305 = vmatpush2.bf16.msra.mxu0 0
      %306 = vmatprep.subr.bf16.mxu0 0
      %307 = vmatpush2.bf16.msra.mxu0 0
      %308 = vmatprep.subr.bf16.mxu0 0
      %309 = vmatpush2.bf16.msra.mxu0 0
      %310 = vmatprep.subr.bf16.mxu0 0
      %311 = vmatpush2.bf16.msra.mxu0 0
      %312 = vmatprep.subr.bf16.mxu0 0
      %313 = vmatpush2.bf16.msra.mxu0 0
      %314 = vmatprep.subr.bf16.mxu0 0
      %315 = vmatpush2.bf16.msra.mxu0 0
      %316 = vmatprep.subr.bf16.mxu0 0
      %317 = vmatpush2.bf16.msra.mxu0 0
      %318 = vmatprep.mubr.bf16.mxu0 0
      %319 = vmatmul.mubr.bf16.gmra.mxu0 %v154
      %v320 = vpop.f32.mrf.mxu0
      %v321 = vadd.f32 %v272, %v320
      %v322 = vpop.f32.mrf.mxu0
      %v323 = vpop.f32.mrf.mxu0
      %v324 = vpop.f32.mrf.mxu0
      %325 = vdwg.mxu0
      %s326 = scalar_lea.vmem %s3, 32
      %v327 = vld [vmem:[%s326] sm:$0xf]
      %v328 = vld [vmem:[%s326 + $0x4] sm:$0xf]
      %v329 = vld [vmem:[%s326 + $0x8] sm:$0xf]
      %v330 = vld [vmem:[%s326 + $0xc] sm:$0xf]
      %s331 = scalar_lea.vmem %s5, 2
      %v332 = vld [vmem:[%s331] sm:$0x1]
      %v334 = vlaneseq
      %v335 = vshrl.u32 %v334, 7
      %v336 = vsub.s32 0, %v335
      %v337 = vrot.slane %v332, %v336
      %v343 = vunpack.c.l.b16 %v327
      %v344 = vunpack.c.l.b16 %v328
      %v345 = vunpack.c.l.b16 %v329
      %v346 = vunpack.c.l.b16 %v330
      %v347 = vpack.c.b16 %v344, %v343
      %v348 = vpack.c.b16 %v346, %v345
      %351 = vmatprep.subr.bf16.mxu0 0
      %352 = vmatpush1.bf16.msra.mxu0 0
      %353 = vmatprep.subr.bf16.mxu0 0
      %354 = vmatpush1.bf16.msra.mxu0 0
      %355 = vmatprep.subr.bf16.mxu0 0
      %356 = vmatpush1.bf16.msra.mxu0 0
      %357 = vmatprep.subr.bf16.mxu0 0
      %358 = vmatpush1.bf16.msra.mxu0 0
      %359 = vmatprep.subr.bf16.mxu0 0
      %360 = vmatpush1.bf16.msra.mxu0 0
      %361 = vmatprep.subr.bf16.mxu0 0
      %362 = vmatpush1.bf16.msra.mxu0 0
      %363 = vmatprep.subr.bf16.mxu0 0
      %364 = vmatpush1.bf16.msra.mxu0 %v348
      %365 = vmatprep.subr.bf16.mxu0 0
      %366 = vmatpush1.bf16.msra.mxu0 %v347
      %367 = vmatprep.subr.bf16.mxu0 0
      %368 = vmatpush2.bf16.msra.mxu0 0
      %369 = vmatprep.subr.bf16.mxu0 0
      %370 = vmatpush2.bf16.msra.mxu0 0
      %371 = vmatprep.subr.bf16.mxu0 0
      %372 = vmatpush2.bf16.msra.mxu0 0
      %373 = vmatprep.subr.bf16.mxu0 0
      %374 = vmatpush2.bf16.msra.mxu0 0
      %375 = vmatprep.subr.bf16.mxu0 0
      %376 = vmatpush2.bf16.msra.mxu0 0
      %377 = vmatprep.subr.bf16.mxu0 0
      %378 = vmatpush2.bf16.msra.mxu0 0
      %379 = vmatprep.subr.bf16.mxu0 0
      %380 = vmatpush2.bf16.msra.mxu0 0
      %381 = vmatprep.subr.bf16.mxu0 0
      %382 = vmatpush2.bf16.msra.mxu0 0
      %383 = vmatprep.mubr.bf16.mxu0 0
      %384 = vmatmul.mubr.bf16.gmra.mxu0 %v88
      %v385 = vpop.f32.mrf.mxu0
      %v386 = vadd.f32 %v337, %v385
      %v387 = vpop.f32.mrf.mxu0
      %v388 = vpop.f32.mrf.mxu0
      %v389 = vpop.f32.mrf.mxu0
      %390 = vdwg.mxu0
      %s391 = scalar_lea.vmem %s4, 32
      %v392 = vld [vmem:[%s391] sm:$0xf]
      %v393 = vld [vmem:[%s391 + $0x4] sm:$0xf]
      %v394 = vld [vmem:[%s391 + $0x8] sm:$0xf]
      %v395 = vld [vmem:[%s391 + $0xc] sm:$0xf]
      %s396 = scalar_lea.vmem %s6, 2
      %v397 = vld [vmem:[%s396] sm:$0x1]
      %v399 = vlaneseq
      %v400 = vshrl.u32 %v399, 7
      %v401 = vsub.s32 0, %v400
      %v402 = vrot.slane %v397, %v401
      %v408 = vunpack.c.l.b16 %v392
      %v409 = vunpack.c.l.b16 %v393
      %v410 = vunpack.c.l.b16 %v394
      %v411 = vunpack.c.l.b16 %v395
      %v412 = vpack.c.b16 %v409, %v408
      %v413 = vpack.c.b16 %v411, %v410
      %416 = vmatprep.subr.bf16.mxu0 0
      %417 = vmatpush1.bf16.msra.mxu0 0
      %418 = vmatprep.subr.bf16.mxu0 0
      %419 = vmatpush1.bf16.msra.mxu0 0
      %420 = vmatprep.subr.bf16.mxu0 0
      %421 = vmatpush1.bf16.msra.mxu0 0
      %422 = vmatprep.subr.bf16.mxu0 0
      %423 = vmatpush1.bf16.msra.mxu0 0
      %424 = vmatprep.subr.bf16.mxu0 0
      %425 = vmatpush1.bf16.msra.mxu0 0
      %426 = vmatprep.subr.bf16.mxu0 0
      %427 = vmatpush1.bf16.msra.mxu0 0
      %428 = vmatprep.subr.bf16.mxu0 0
      %429 = vmatpush1.bf16.msra.mxu0 %v413
      %430 = vmatprep.subr.bf16.mxu0 0
      %431 = vmatpush1.bf16.msra.mxu0 %v412
      %432 = vmatprep.subr.bf16.mxu0 0
      %433 = vmatpush2.bf16.msra.mxu0 0
      %434 = vmatprep.subr.bf16.mxu0 0
      %435 = vmatpush2.bf16.msra.mxu0 0
      %436 = vmatprep.subr.bf16.mxu0 0
      %437 = vmatpush2.bf16.msra.mxu0 0
      %438 = vmatprep.subr.bf16.mxu0 0
      %439 = vmatpush2.bf16.msra.mxu0 0
      %440 = vmatprep.subr.bf16.mxu0 0
      %441 = vmatpush2.bf16.msra.mxu0 0
      %442 = vmatprep.subr.bf16.mxu0 0
      %443 = vmatpush2.bf16.msra.mxu0 0
      %444 = vmatprep.subr.bf16.mxu0 0
      %445 = vmatpush2.bf16.msra.mxu0 0
      %446 = vmatprep.subr.bf16.mxu0 0
      %447 = vmatpush2.bf16.msra.mxu0 0
      %448 = vmatprep.mubr.bf16.mxu0 0
      %449 = vmatmul.mubr.bf16.gmra.mxu0 %v154
      %v450 = vpop.f32.mrf.mxu0
      %v451 = vadd.f32 %v402, %v450
      %v452 = vpop.f32.mrf.mxu0
      %v453 = vpop.f32.mrf.mxu0
      %v454 = vpop.f32.mrf.mxu0
      %455 = vdwg.mxu0
      %v456 = vadd.f32 %v125, %v191
      %v457 = vxor.u32 %v456, 2147483648
      %v458 = vmul.f32 %v457, 1.442695
      %v459 = vpow.pop %v458
      %v460 = vadd.f32 %v459, 1.0
      %v461 = vrcp.pop %v460
      %v462 = vmul.f32 1.0, %v461
      %v463 = vadd.f32 %v256, %v321
      %v464 = vxor.u32 %v463, 2147483648
      %v465 = vmul.f32 %v464, 1.442695
      %v466 = vpow.pop %v465
      %v467 = vadd.f32 %v466, 1.0
      %v468 = vrcp.pop %v467
      %v469 = vmul.f32 1.0, %v468
      %v470 = vmul.f32 %v462, %v451
      %v471 = vadd.f32 %v386, %v470
      %v472 = vtanh.pop %v471
      %v473 = vsub.f32 1.0, %v469
      %v474 = vmul.f32 %v473, %v472
      %v475 = vmul.f32 %v469, %v61
      %v476 = vadd.f32 %v474, %v475
      %477 = vst.msk [vmem:[%s12] sm:$0xff] %vm86, %v476
      %v478 = vpack.c.bf16 %v476, %v476
      %v479 = vld [vmem:[%s2] sm:$0xf]
      %v480 = vld [vmem:[%s2 + $0x4] sm:$0xf]
      %v481 = vld [vmem:[%s2 + $0x8] sm:$0xf]
      %v482 = vld [vmem:[%s2 + $0xc] sm:$0xf]
      %v483 = vld [vmem:[%s2 + $0x10] sm:$0xf]
      %v484 = vld [vmem:[%s2 + $0x14] sm:$0xf]
      %v485 = vld [vmem:[%s2 + $0x18] sm:$0xf]
      %v486 = vld [vmem:[%s2 + $0x1c] sm:$0xf]
      %v489 = vunpack.c.l.s4 1966171168
      %v490 = vunpack.c.0.s8 %v489
      %v491 = vlaneseq
      %v492 = vshrl.u32 %v491, 7
      %v493 = vsub.s32 %v490, %v492
      %v494 = vrot.slane %v478, %v493
      %v495 = vcombine.high %v494, %v494
      %v497 = vunpack.c.l.s4 1966171168
      %v498 = vunpack.c.0.s8 %v497
      %v499 = vlaneseq
      %v500 = vshrl.u32 %v499, 7
      %v501 = vsub.s32 %v498, %v500
      %v502 = vrot.slane %v494, %v501
      %v504 = vunpack.c.l.s4 1966171168
      %v505 = vunpack.c.0.s8 %v504
      %v506 = vlaneseq
      %v507 = vshrl.u32 %v506, 7
      %v508 = vsub.s32 %v505, %v507
      %v509 = vrot.slane %v495, %v508
      %v510 = vcombine.high %v502, %v502
      %v511 = vcombine.high %v509, %v509
      %v512 = vunpack.i.l.s16 %v502
      %v513 = vunpack.i.h.s16 %v502
      %v514 = vunpack.i.l.s16 %v509
      %v515 = vunpack.i.h.s16 %v509
      %v516 = vunpack.i.l.s16 %v510
      %v517 = vunpack.i.h.s16 %v510
      %v518 = vunpack.i.l.s16 %v511
      %v519 = vunpack.i.h.s16 %v511
      %v520 = vpack.i.b16 %v512, %v512
      %v521 = vlaneseq
      %v522 = vshrl.u32 %v521, 7
      %v523 = vsub.s32 0, %v522
      %v524 = vrot.slane %v520, %v523
      %v526 = vsel %vm86, %v524, 0
      %v529 = vsel %vm86, %v479, 0
      %531 = vmatprep.subr.bf16.mxu0 0
      %532 = vmatpush1.bf16.xpose.msra.mxu0 0
      %533 = vmatprep.subr.bf16.mxu0 0
      %534 = vmatpush1.bf16.xpose.msra.mxu0 0
      %535 = vmatprep.subr.bf16.mxu0 0
      %536 = vmatpush1.bf16.xpose.msra.mxu0 0
      %537 = vmatprep.subr.bf16.mxu0 0
      %538 = vmatpush1.bf16.xpose.msra.mxu0 0
      %539 = vmatprep.subr.bf16.mxu0 0
      %540 = vmatpush1.bf16.xpose.msra.mxu0 0
      %541 = vmatprep.subr.bf16.mxu0 0
      %542 = vmatpush1.bf16.xpose.msra.mxu0 0
      %543 = vmatprep.subr.bf16.mxu0 0
      %544 = vmatpush1.bf16.xpose.msra.mxu0 0
      %545 = vmatprep.subr.bf16.mxu0 0
      %546 = vmatpush1.bf16.xpose.msra.mxu0 %v529
      %547 = vmatprep.subr.bf16.mxu0 0
      %548 = vmatpush2.bf16.xpose.msra.mxu0 0
      %549 = vmatprep.subr.bf16.mxu0 0
      %550 = vmatpush2.bf16.xpose.msra.mxu0 0
      %551 = vmatprep.subr.bf16.mxu0 0
      %552 = vmatpush2.bf16.xpose.msra.mxu0 0
      %553 = vmatprep.subr.bf16.mxu0 0
      %554 = vmatpush2.bf16.xpose.msra.mxu0 0
      %555 = vmatprep.subr.bf16.mxu0 0
      %556 = vmatpush2.bf16.xpose.msra.mxu0 0
      %557 = vmatprep.subr.bf16.mxu0 0
      %558 = vmatpush2.bf16.xpose.msra.mxu0 0
      %559 = vmatprep.subr.bf16.mxu0 0
      %560 = vmatpush2.bf16.xpose.msra.mxu0 0
      %561 = vmatprep.subr.bf16.mxu0 0
      %562 = vmatpush2.bf16.xpose.msra.mxu0 0
      %563 = vmatprep.mubr.bf16.mxu0 0
      %564 = vmatmul.mubr.bf16.gmra.mxu0 %v526
      %v565 = vpop.f32.mrf.mxu0
      %v566 = vadd.f32 0.0, %v565
      %v567 = vpop.f32.mrf.mxu0
      %v568 = vpop.f32.mrf.mxu0
      %v569 = vpop.f32.mrf.mxu0
      %570 = vdwg.mxu0
      %v571 = vpack.i.b16 %v513, %v513
      %v572 = vlaneseq
      %v573 = vshrl.u32 %v572, 7
      %v574 = vsub.s32 0, %v573
      %v575 = vrot.slane %v571, %v574
      %v577 = vsel %vm86, %v575, 0
      %v580 = vsel %vm86, %v480, 0
      %582 = vmatprep.subr.bf16.mxu0 0
      %583 = vmatpush1.bf16.xpose.msra.mxu0 0
      %584 = vmatprep.subr.bf16.mxu0 0
      %585 = vmatpush1.bf16.xpose.msra.mxu0 0
      %586 = vmatprep.subr.bf16.mxu0 0
      %587 = vmatpush1.bf16.xpose.msra.mxu0 0
      %588 = vmatprep.subr.bf16.mxu0 0
      %589 = vmatpush1.bf16.xpose.msra.mxu0 0
      %590 = vmatprep.subr.bf16.mxu0 0
      %591 = vmatpush1.bf16.xpose.msra.mxu0 0
      %592 = vmatprep.subr.bf16.mxu0 0
      %593 = vmatpush1.bf16.xpose.msra.mxu0 0
      %594 = vmatprep.subr.bf16.mxu0 0
      %595 = vmatpush1.bf16.xpose.msra.mxu0 0
      %596 = vmatprep.subr.bf16.mxu0 0
      %597 = vmatpush1.bf16.xpose.msra.mxu0 %v580
      %598 = vmatprep.subr.bf16.mxu0 0
      %599 = vmatpush2.bf16.xpose.msra.mxu0 0
      %600 = vmatprep.subr.bf16.mxu0 0
      %601 = vmatpush2.bf16.xpose.msra.mxu0 0
      %602 = vmatprep.subr.bf16.mxu0 0
      %603 = vmatpush2.bf16.xpose.msra.mxu0 0
      %604 = vmatprep.subr.bf16.mxu0 0
      %605 = vmatpush2.bf16.xpose.msra.mxu0 0
      %606 = vmatprep.subr.bf16.mxu0 0
      %607 = vmatpush2.bf16.xpose.msra.mxu0 0
      %608 = vmatprep.subr.bf16.mxu0 0
      %609 = vmatpush2.bf16.xpose.msra.mxu0 0
      %610 = vmatprep.subr.bf16.mxu0 0
      %611 = vmatpush2.bf16.xpose.msra.mxu0 0
      %612 = vmatprep.subr.bf16.mxu0 0
      %613 = vmatpush2.bf16.xpose.msra.mxu0 0
      %614 = vmatprep.mubr.bf16.mxu0 0
      %615 = vmatmul.mubr.bf16.gmra.mxu0 %v577
      %v616 = vpop.f32.mrf.mxu0
      %v617 = vadd.f32 0.0, %v616
      %v618 = vpop.f32.mrf.mxu0
      %v619 = vpop.f32.mrf.mxu0
      %v620 = vpop.f32.mrf.mxu0
      %621 = vdwg.mxu0
      %v622 = vpack.i.b16 %v514, %v514
      %v623 = vlaneseq
      %v624 = vshrl.u32 %v623, 7
      %v625 = vsub.s32 0, %v624
      %v626 = vrot.slane %v622, %v625
      %v628 = vsel %vm86, %v626, 0
      %v631 = vsel %vm86, %v481, 0
      %633 = vmatprep.subr.bf16.mxu0 0
      %634 = vmatpush1.bf16.xpose.msra.mxu0 0
      %635 = vmatprep.subr.bf16.mxu0 0
      %636 = vmatpush1.bf16.xpose.msra.mxu0 0
      %637 = vmatprep.subr.bf16.mxu0 0
      %638 = vmatpush1.bf16.xpose.msra.mxu0 0
      %639 = vmatprep.subr.bf16.mxu0 0
      %640 = vmatpush1.bf16.xpose.msra.mxu0 0
      %641 = vmatprep.subr.bf16.mxu0 0
      %642 = vmatpush1.bf16.xpose.msra.mxu0 0
      %643 = vmatprep.subr.bf16.mxu0 0
      %644 = vmatpush1.bf16.xpose.msra.mxu0 0
      %645 = vmatprep.subr.bf16.mxu0 0
      %646 = vmatpush1.bf16.xpose.msra.mxu0 0
      %647 = vmatprep.subr.bf16.mxu0 0
      %648 = vmatpush1.bf16.xpose.msra.mxu0 %v631
      %649 = vmatprep.subr.bf16.mxu0 0
      %650 = vmatpush2.bf16.xpose.msra.mxu0 0
      %651 = vmatprep.subr.bf16.mxu0 0
      %652 = vmatpush2.bf16.xpose.msra.mxu0 0
      %653 = vmatprep.subr.bf16.mxu0 0
      %654 = vmatpush2.bf16.xpose.msra.mxu0 0
      %655 = vmatprep.subr.bf16.mxu0 0
      %656 = vmatpush2.bf16.xpose.msra.mxu0 0
      %657 = vmatprep.subr.bf16.mxu0 0
      %658 = vmatpush2.bf16.xpose.msra.mxu0 0
      %659 = vmatprep.subr.bf16.mxu0 0
      %660 = vmatpush2.bf16.xpose.msra.mxu0 0
      %661 = vmatprep.subr.bf16.mxu0 0
      %662 = vmatpush2.bf16.xpose.msra.mxu0 0
      %663 = vmatprep.subr.bf16.mxu0 0
      %664 = vmatpush2.bf16.xpose.msra.mxu0 0
      %665 = vmatprep.mubr.bf16.mxu0 0
      %666 = vmatmul.mubr.bf16.gmra.mxu0 %v628
      %v667 = vpop.f32.mrf.mxu0
      %v668 = vadd.f32 0.0, %v667
      %v669 = vpop.f32.mrf.mxu0
      %v670 = vpop.f32.mrf.mxu0
      %v671 = vpop.f32.mrf.mxu0
      %672 = vdwg.mxu0
      %v673 = vpack.i.b16 %v515, %v515
      %v674 = vlaneseq
      %v675 = vshrl.u32 %v674, 7
      %v676 = vsub.s32 0, %v675
      %v677 = vrot.slane %v673, %v676
      %v679 = vsel %vm86, %v677, 0
      %v682 = vsel %vm86, %v482, 0
      %684 = vmatprep.subr.bf16.mxu0 0
      %685 = vmatpush1.bf16.xpose.msra.mxu0 0
      %686 = vmatprep.subr.bf16.mxu0 0
      %687 = vmatpush1.bf16.xpose.msra.mxu0 0
      %688 = vmatprep.subr.bf16.mxu0 0
      %689 = vmatpush1.bf16.xpose.msra.mxu0 0
      %690 = vmatprep.subr.bf16.mxu0 0
      %691 = vmatpush1.bf16.xpose.msra.mxu0 0
      %692 = vmatprep.subr.bf16.mxu0 0
      %693 = vmatpush1.bf16.xpose.msra.mxu0 0
      %694 = vmatprep.subr.bf16.mxu0 0
      %695 = vmatpush1.bf16.xpose.msra.mxu0 0
      %696 = vmatprep.subr.bf16.mxu0 0
      %697 = vmatpush1.bf16.xpose.msra.mxu0 0
      %698 = vmatprep.subr.bf16.mxu0 0
      %699 = vmatpush1.bf16.xpose.msra.mxu0 %v682
      %700 = vmatprep.subr.bf16.mxu0 0
      %701 = vmatpush2.bf16.xpose.msra.mxu0 0
      %702 = vmatprep.subr.bf16.mxu0 0
      %703 = vmatpush2.bf16.xpose.msra.mxu0 0
      %704 = vmatprep.subr.bf16.mxu0 0
      %705 = vmatpush2.bf16.xpose.msra.mxu0 0
      %706 = vmatprep.subr.bf16.mxu0 0
      %707 = vmatpush2.bf16.xpose.msra.mxu0 0
      %708 = vmatprep.subr.bf16.mxu0 0
      %709 = vmatpush2.bf16.xpose.msra.mxu0 0
      %710 = vmatprep.subr.bf16.mxu0 0
      %711 = vmatpush2.bf16.xpose.msra.mxu0 0
      %712 = vmatprep.subr.bf16.mxu0 0
      %713 = vmatpush2.bf16.xpose.msra.mxu0 0
      %714 = vmatprep.subr.bf16.mxu0 0
      %715 = vmatpush2.bf16.xpose.msra.mxu0 0
      %716 = vmatprep.mubr.bf16.mxu0 0
      %717 = vmatmul.mubr.bf16.gmra.mxu0 %v679
      %v718 = vpop.f32.mrf.mxu0
      %v719 = vadd.f32 0.0, %v718
      %v720 = vpop.f32.mrf.mxu0
      %v721 = vpop.f32.mrf.mxu0
      %v722 = vpop.f32.mrf.mxu0
      %723 = vdwg.mxu0
      %v724 = vpack.i.b16 %v516, %v516
      %v725 = vlaneseq
      %v726 = vshrl.u32 %v725, 7
      %v727 = vsub.s32 0, %v726
      %v728 = vrot.slane %v724, %v727
      %v730 = vsel %vm86, %v728, 0
      %v733 = vsel %vm86, %v483, 0
      %735 = vmatprep.subr.bf16.mxu0 0
      %736 = vmatpush1.bf16.xpose.msra.mxu0 0
      %737 = vmatprep.subr.bf16.mxu0 0
      %738 = vmatpush1.bf16.xpose.msra.mxu0 0
      %739 = vmatprep.subr.bf16.mxu0 0
      %740 = vmatpush1.bf16.xpose.msra.mxu0 0
      %741 = vmatprep.subr.bf16.mxu0 0
      %742 = vmatpush1.bf16.xpose.msra.mxu0 0
      %743 = vmatprep.subr.bf16.mxu0 0
      %744 = vmatpush1.bf16.xpose.msra.mxu0 0
      %745 = vmatprep.subr.bf16.mxu0 0
      %746 = vmatpush1.bf16.xpose.msra.mxu0 0
      %747 = vmatprep.subr.bf16.mxu0 0
      %748 = vmatpush1.bf16.xpose.msra.mxu0 0
      %749 = vmatprep.subr.bf16.mxu0 0
      %750 = vmatpush1.bf16.xpose.msra.mxu0 %v733
      %751 = vmatprep.subr.bf16.mxu0 0
      %752 = vmatpush2.bf16.xpose.msra.mxu0 0
      %753 = vmatprep.subr.bf16.mxu0 0
      %754 = vmatpush2.bf16.xpose.msra.mxu0 0
      %755 = vmatprep.subr.bf16.mxu0 0
      %756 = vmatpush2.bf16.xpose.msra.mxu0 0
      %757 = vmatprep.subr.bf16.mxu0 0
      %758 = vmatpush2.bf16.xpose.msra.mxu0 0
      %759 = vmatprep.subr.bf16.mxu0 0
      %760 = vmatpush2.bf16.xpose.msra.mxu0 0
      %761 = vmatprep.subr.bf16.mxu0 0
      %762 = vmatpush2.bf16.xpose.msra.mxu0 0
      %763 = vmatprep.subr.bf16.mxu0 0
      %764 = vmatpush2.bf16.xpose.msra.mxu0 0
      %765 = vmatprep.subr.bf16.mxu0 0
      %766 = vmatpush2.bf16.xpose.msra.mxu0 0
      %767 = vmatprep.mubr.bf16.mxu0 0
      %768 = vmatmul.mubr.bf16.gmra.mxu0 %v730
      %v769 = vpop.f32.mrf.mxu0
      %v770 = vadd.f32 0.0, %v769
      %v771 = vpop.f32.mrf.mxu0
      %v772 = vpop.f32.mrf.mxu0
      %v773 = vpop.f32.mrf.mxu0
      %774 = vdwg.mxu0
      %v775 = vpack.i.b16 %v517, %v517
      %v776 = vlaneseq
      %v777 = vshrl.u32 %v776, 7
      %v778 = vsub.s32 0, %v777
      %v779 = vrot.slane %v775, %v778
      %v781 = vsel %vm86, %v779, 0
      %v784 = vsel %vm86, %v484, 0
      %786 = vmatprep.subr.bf16.mxu0 0
      %787 = vmatpush1.bf16.xpose.msra.mxu0 0
      %788 = vmatprep.subr.bf16.mxu0 0
      %789 = vmatpush1.bf16.xpose.msra.mxu0 0
      %790 = vmatprep.subr.bf16.mxu0 0
      %791 = vmatpush1.bf16.xpose.msra.mxu0 0
      %792 = vmatprep.subr.bf16.mxu0 0
      %793 = vmatpush1.bf16.xpose.msra.mxu0 0
      %794 = vmatprep.subr.bf16.mxu0 0
      %795 = vmatpush1.bf16.xpose.msra.mxu0 0
      %796 = vmatprep.subr.bf16.mxu0 0
      %797 = vmatpush1.bf16.xpose.msra.mxu0 0
      %798 = vmatprep.subr.bf16.mxu0 0
      %799 = vmatpush1.bf16.xpose.msra.mxu0 0
      %800 = vmatprep.subr.bf16.mxu0 0
      %801 = vmatpush1.bf16.xpose.msra.mxu0 %v784
      %802 = vmatprep.subr.bf16.mxu0 0
      %803 = vmatpush2.bf16.xpose.msra.mxu0 0
      %804 = vmatprep.subr.bf16.mxu0 0
      %805 = vmatpush2.bf16.xpose.msra.mxu0 0
      %806 = vmatprep.subr.bf16.mxu0 0
      %807 = vmatpush2.bf16.xpose.msra.mxu0 0
      %808 = vmatprep.subr.bf16.mxu0 0
      %809 = vmatpush2.bf16.xpose.msra.mxu0 0
      %810 = vmatprep.subr.bf16.mxu0 0
      %811 = vmatpush2.bf16.xpose.msra.mxu0 0
      %812 = vmatprep.subr.bf16.mxu0 0
      %813 = vmatpush2.bf16.xpose.msra.mxu0 0
      %814 = vmatprep.subr.bf16.mxu0 0
      %815 = vmatpush2.bf16.xpose.msra.mxu0 0
      %816 = vmatprep.subr.bf16.mxu0 0
      %817 = vmatpush2.bf16.xpose.msra.mxu0 0
      %818 = vmatprep.mubr.bf16.mxu0 0
      %819 = vmatmul.mubr.bf16.gmra.mxu0 %v781
      %v820 = vpop.f32.mrf.mxu0
      %v821 = vadd.f32 0.0, %v820
      %v822 = vpop.f32.mrf.mxu0
      %v823 = vpop.f32.mrf.mxu0
      %v824 = vpop.f32.mrf.mxu0
      %825 = vdwg.mxu0
      %v826 = vpack.i.b16 %v518, %v518
      %v827 = vlaneseq
      %v828 = vshrl.u32 %v827, 7
      %v829 = vsub.s32 0, %v828
      %v830 = vrot.slane %v826, %v829
      %v832 = vsel %vm86, %v830, 0
      %v835 = vsel %vm86, %v485, 0
      %837 = vmatprep.subr.bf16.mxu0 0
      %838 = vmatpush1.bf16.xpose.msra.mxu0 0
      %839 = vmatprep.subr.bf16.mxu0 0
      %840 = vmatpush1.bf16.xpose.msra.mxu0 0
      %841 = vmatprep.subr.bf16.mxu0 0
      %842 = vmatpush1.bf16.xpose.msra.mxu0 0
      %843 = vmatprep.subr.bf16.mxu0 0
      %844 = vmatpush1.bf16.xpose.msra.mxu0 0
      %845 = vmatprep.subr.bf16.mxu0 0
      %846 = vmatpush1.bf16.xpose.msra.mxu0 0
      %847 = vmatprep.subr.bf16.mxu0 0
      %848 = vmatpush1.bf16.xpose.msra.mxu0 0
      %849 = vmatprep.subr.bf16.mxu0 0
      %850 = vmatpush1.bf16.xpose.msra.mxu0 0
      %851 = vmatprep.subr.bf16.mxu0 0
      %852 = vmatpush1.bf16.xpose.msra.mxu0 %v835
      %853 = vmatprep.subr.bf16.mxu0 0
      %854 = vmatpush2.bf16.xpose.msra.mxu0 0
      %855 = vmatprep.subr.bf16.mxu0 0
      %856 = vmatpush2.bf16.xpose.msra.mxu0 0
      %857 = vmatprep.subr.bf16.mxu0 0
      %858 = vmatpush2.bf16.xpose.msra.mxu0 0
      %859 = vmatprep.subr.bf16.mxu0 0
      %860 = vmatpush2.bf16.xpose.msra.mxu0 0
      %861 = vmatprep.subr.bf16.mxu0 0
      %862 = vmatpush2.bf16.xpose.msra.mxu0 0
      %863 = vmatprep.subr.bf16.mxu0 0
      %864 = vmatpush2.bf16.xpose.msra.mxu0 0
      %865 = vmatprep.subr.bf16.mxu0 0
      %866 = vmatpush2.bf16.xpose.msra.mxu0 0
      %867 = vmatprep.subr.bf16.mxu0 0
      %868 = vmatpush2.bf16.xpose.msra.mxu0 0
      %869 = vmatprep.mubr.bf16.mxu0 0
      %870 = vmatmul.mubr.bf16.gmra.mxu0 %v832
      %v871 = vpop.f32.mrf.mxu0
      %v872 = vadd.f32 0.0, %v871
      %v873 = vpop.f32.mrf.mxu0
      %v874 = vpop.f32.mrf.mxu0
      %v875 = vpop.f32.mrf.mxu0
      %876 = vdwg.mxu0
      %v877 = vpack.i.b16 %v519, %v519
      %v878 = vlaneseq
      %v879 = vshrl.u32 %v878, 7
      %v880 = vsub.s32 0, %v879
      %v881 = vrot.slane %v877, %v880
      %v883 = vsel %vm86, %v881, 0
      %v886 = vsel %vm86, %v486, 0
      %888 = vmatprep.subr.bf16.mxu0 0
      %889 = vmatpush1.bf16.xpose.msra.mxu0 0
      %890 = vmatprep.subr.bf16.mxu0 0
      %891 = vmatpush1.bf16.xpose.msra.mxu0 0
      %892 = vmatprep.subr.bf16.mxu0 0
      %893 = vmatpush1.bf16.xpose.msra.mxu0 0
      %894 = vmatprep.subr.bf16.mxu0 0
      %895 = vmatpush1.bf16.xpose.msra.mxu0 0
      %896 = vmatprep.subr.bf16.mxu0 0
      %897 = vmatpush1.bf16.xpose.msra.mxu0 0
      %898 = vmatprep.subr.bf16.mxu0 0
      %899 = vmatpush1.bf16.xpose.msra.mxu0 0
      %900 = vmatprep.subr.bf16.mxu0 0
      %901 = vmatpush1.bf16.xpose.msra.mxu0 0
      %902 = vmatprep.subr.bf16.mxu0 0
      %903 = vmatpush1.bf16.xpose.msra.mxu0 %v886
      %904 = vmatprep.subr.bf16.mxu0 0
      %905 = vmatpush2.bf16.xpose.msra.mxu0 0
      %906 = vmatprep.subr.bf16.mxu0 0
      %907 = vmatpush2.bf16.xpose.msra.mxu0 0
      %908 = vmatprep.subr.bf16.mxu0 0
      %909 = vmatpush2.bf16.xpose.msra.mxu0 0
      %910 = vmatprep.subr.bf16.mxu0 0
      %911 = vmatpush2.bf16.xpose.msra.mxu0 0
      %912 = vmatprep.subr.bf16.mxu0 0
      %913 = vmatpush2.bf16.xpose.msra.mxu0 0
      %914 = vmatprep.subr.bf16.mxu0 0
      %915 = vmatpush2.bf16.xpose.msra.mxu0 0
      %916 = vmatprep.subr.bf16.mxu0 0
      %917 = vmatpush2.bf16.xpose.msra.mxu0 0
      %918 = vmatprep.subr.bf16.mxu0 0
      %919 = vmatpush2.bf16.xpose.msra.mxu0 0
      %920 = vmatprep.mubr.bf16.mxu0 0
      %921 = vmatmul.mubr.bf16.gmra.mxu0 %v883
      %v922 = vpop.f32.mrf.mxu0
      %v923 = vadd.f32 0.0, %v922
      %v924 = vpop.f32.mrf.mxu0
      %v925 = vpop.f32.mrf.mxu0
      %v926 = vpop.f32.mrf.mxu0
      %927 = vdwg.mxu0
      %vm928 = vcmask 57344
      %v929 = vsel %vm928, %v566, -inf
      %930 = vmax.xlane.f32.xlu0 %v929
      %v931 = vpop.xlane.xlu0 %930
      %v932 = vsel %vm928, %v617, -inf
      %933 = vmax.xlane.f32.xlu0 %v932
      %v934 = vpop.xlane.xlu0 %933
      %v935 = vsel %vm928, %v668, -inf
      %936 = vmax.xlane.f32.xlu0 %v935
      %v937 = vpop.xlane.xlu0 %936
      %v938 = vsel %vm928, %v719, -inf
      %939 = vmax.xlane.f32.xlu0 %v938
      %v940 = vpop.xlane.xlu0 %939
      %v941 = vsel %vm928, %v770, -inf
      %942 = vmax.xlane.f32.xlu0 %v941
      %v943 = vpop.xlane.xlu0 %942
      %v944 = vsel %vm928, %v821, -inf
      %945 = vmax.xlane.f32.xlu0 %v944
      %v946 = vpop.xlane.xlu0 %945
      %v947 = vsel %vm928, %v872, -inf
      %948 = vmax.xlane.f32.xlu0 %v947
      %v949 = vpop.xlane.xlu0 %948
      %v950 = vsel %vm928, %v923, -inf
      %951 = vmax.xlane.f32.xlu0 %v950
      %v952 = vpop.xlane.xlu0 %951
      %v953 = vsub.f32 %v566, %v931
      %v954 = vsub.f32 %v617, %v934
      %v955 = vsub.f32 %v668, %v937
      %v956 = vsub.f32 %v719, %v940
      %v957 = vsub.f32 %v770, %v943
      %v958 = vsub.f32 %v821, %v946
      %v959 = vsub.f32 %v872, %v949
      %v960 = vsub.f32 %v923, %v952
      %v961 = vmul.f32 %v953, 1.442695
      %v962 = vpow.pop %v961
      %v963 = vmul.f32 %v954, 1.442695
      %v964 = vpow.pop %v963
      %v965 = vmul.f32 %v955, 1.442695
      %v966 = vpow.pop %v965
      %v967 = vmul.f32 %v956, 1.442695
      %v968 = vpow.pop %v967
      %v969 = vmul.f32 %v957, 1.442695
      %v970 = vpow.pop %v969
      %v971 = vmul.f32 %v958, 1.442695
      %v972 = vpow.pop %v971
      %v973 = vmul.f32 %v959, 1.442695
      %v974 = vpow.pop %v973
      %v975 = vmul.f32 %v960, 1.442695
      %v976 = vpow.pop %v975
      %v977 = vsel %vm928, %v962, 0.0
      %978 = vadd.xlane.f32.xlu0 %v977
      %v979 = vpop.xlane.xlu0 %978
      %v980 = vsel %vm928, %v964, 0.0
      %981 = vadd.xlane.f32.xlu0 %v980
      %v982 = vpop.xlane.xlu0 %981
      %v983 = vsel %vm928, %v966, 0.0
      %984 = vadd.xlane.f32.xlu0 %v983
      %v985 = vpop.xlane.xlu0 %984
      %v986 = vsel %vm928, %v968, 0.0
      %987 = vadd.xlane.f32.xlu0 %v986
      %v988 = vpop.xlane.xlu0 %987
      %v989 = vsel %vm928, %v970, 0.0
      %990 = vadd.xlane.f32.xlu0 %v989
      %v991 = vpop.xlane.xlu0 %990
      %v992 = vsel %vm928, %v972, 0.0
      %993 = vadd.xlane.f32.xlu0 %v992
      %v994 = vpop.xlane.xlu0 %993
      %v995 = vsel %vm928, %v974, 0.0
      %996 = vadd.xlane.f32.xlu0 %v995
      %v997 = vpop.xlane.xlu0 %996
      %v998 = vsel %vm928, %v976, 0.0
      %999 = vadd.xlane.f32.xlu0 %v998
      %v1000 = vpop.xlane.xlu0 %999
      %v1001 = vrcp.pop %v979
      %v1002 = vrcp.pop %v982
      %v1003 = vrcp.pop %v985
      %v1004 = vrcp.pop %v988
      %v1005 = vrcp.pop %v991
      %v1006 = vrcp.pop %v994
      %v1007 = vrcp.pop %v997
      %v1008 = vrcp.pop %v1000
      %v1009 = vmul.f32 %v962, %v1001
      %v1010 = vmul.f32 %v964, %v1002
      %v1011 = vmul.f32 %v966, %v1003
      %v1012 = vmul.f32 %v968, %v1004
      %v1013 = vmul.f32 %v970, %v1005
      %v1014 = vmul.f32 %v972, %v1006
      %v1015 = vmul.f32 %v974, %v1007
      %v1016 = vmul.f32 %v976, %v1008
      %1017 = vst.msk [vmem:[%s13] sm:$0x1] %vm928, %v1009
      %1018 = vst.msk [vmem:[%s13 + $0x1] sm:$0x1] %vm928, %v1010
      %1019 = vst.msk [vmem:[%s13 + $0x2] sm:$0x1] %vm928, %v1011
      %1020 = vst.msk [vmem:[%s13 + $0x3] sm:$0x1] %vm928, %v1012
      %1021 = vst.msk [vmem:[%s13 + $0x4] sm:$0x1] %vm928, %v1013
      %1022 = vst.msk [vmem:[%s13 + $0x5] sm:$0x1] %vm928, %v1014
      %1023 = vst.msk [vmem:[%s13 + $0x6] sm:$0x1] %vm928, %v1015
      %1024 = vst.msk [vmem:[%s13 + $0x7] sm:$0x1] %vm928, %v1016
      %v1025 = vpack.c.bf16 %v1009, %v1009
      %v1026 = vpack.c.bf16 %v1010, %v1010
      %v1027 = vpack.c.bf16 %v1011, %v1011
      %v1028 = vpack.c.bf16 %v1012, %v1012
      %v1029 = vpack.c.bf16 %v1013, %v1013
      %v1030 = vpack.c.bf16 %v1014, %v1014
      %v1031 = vpack.c.bf16 %v1015, %v1015
      %v1032 = vpack.c.bf16 %v1016, %v1016
      %vm1033 = vcmask 64512
      %v1035 = vsel %vm1033, %v1025, 0
      %vm1037 = vcmask 1043456
      %v1038 = vsel %vm1037, %v479, 0
      %1040 = vmatprep.subr.bf16.mxu0 0
      %1041 = vmatpush1.bf16.msra.mxu0 0
      %1042 = vmatprep.subr.bf16.mxu0 0
      %1043 = vmatpush1.bf16.msra.mxu0 0
      %1044 = vmatprep.subr.bf16.mxu0 0
      %1045 = vmatpush1.bf16.msra.mxu0 0
      %1046 = vmatprep.subr.bf16.mxu0 0
      %1047 = vmatpush1.bf16.msra.mxu0 0
      %1048 = vmatprep.subr.bf16.mxu0 0
      %1049 = vmatpush1.bf16.msra.mxu0 0
      %1050 = vmatprep.subr.bf16.mxu0 0
      %1051 = vmatpush1.bf16.msra.mxu0 0
      %1052 = vmatprep.subr.bf16.mxu0 0
      %1053 = vmatpush1.bf16.msra.mxu0 0
      %1054 = vmatprep.subr.bf16.mxu0 0
      %1055 = vmatpush1.bf16.msra.mxu0 %v1038
      %1056 = vmatprep.subr.bf16.mxu0 0
      %1057 = vmatpush2.bf16.msra.mxu0 0
      %1058 = vmatprep.subr.bf16.mxu0 0
      %1059 = vmatpush2.bf16.msra.mxu0 0
      %1060 = vmatprep.subr.bf16.mxu0 0
      %1061 = vmatpush2.bf16.msra.mxu0 0
      %1062 = vmatprep.subr.bf16.mxu0 0
      %1063 = vmatpush2.bf16.msra.mxu0 0
      %1064 = vmatprep.subr.bf16.mxu0 0
      %1065 = vmatpush2.bf16.msra.mxu0 0
      %1066 = vmatprep.subr.bf16.mxu0 0
      %1067 = vmatpush2.bf16.msra.mxu0 0
      %1068 = vmatprep.subr.bf16.mxu0 0
      %1069 = vmatpush2.bf16.msra.mxu0 0
      %1070 = vmatprep.subr.bf16.mxu0 0
      %1071 = vmatpush2.bf16.msra.mxu0 0
      %1072 = vmatprep.mubr.bf16.mxu0 0
      %1073 = vmatmul.mubr.bf16.gmra.mxu0 %v1035
      %v1074 = vpop.f32.mrf.mxu0
      %v1075 = vadd.f32 0.0, %v1074
      %v1076 = vpop.f32.mrf.mxu0
      %v1077 = vpop.f32.mrf.mxu0
      %v1078 = vpop.f32.mrf.mxu0
      %1079 = vdwg.mxu0
      %v1081 = vsel %vm1033, %v1026, 0
      %v1083 = vsel %vm1037, %v480, 0
      %1085 = vmatprep.subr.bf16.mxu0 0
      %1086 = vmatpush1.bf16.msra.mxu0 0
      %1087 = vmatprep.subr.bf16.mxu0 0
      %1088 = vmatpush1.bf16.msra.mxu0 0
      %1089 = vmatprep.subr.bf16.mxu0 0
      %1090 = vmatpush1.bf16.msra.mxu0 0
      %1091 = vmatprep.subr.bf16.mxu0 0
      %1092 = vmatpush1.bf16.msra.mxu0 0
      %1093 = vmatprep.subr.bf16.mxu0 0
      %1094 = vmatpush1.bf16.msra.mxu0 0
      %1095 = vmatprep.subr.bf16.mxu0 0
      %1096 = vmatpush1.bf16.msra.mxu0 0
      %1097 = vmatprep.subr.bf16.mxu0 0
      %1098 = vmatpush1.bf16.msra.mxu0 0
      %1099 = vmatprep.subr.bf16.mxu0 0
      %1100 = vmatpush1.bf16.msra.mxu0 %v1083
      %1101 = vmatprep.subr.bf16.mxu0 0
      %1102 = vmatpush2.bf16.msra.mxu0 0
      %1103 = vmatprep.subr.bf16.mxu0 0
      %1104 = vmatpush2.bf16.msra.mxu0 0
      %1105 = vmatprep.subr.bf16.mxu0 0
      %1106 = vmatpush2.bf16.msra.mxu0 0
      %1107 = vmatprep.subr.bf16.mxu0 0
      %1108 = vmatpush2.bf16.msra.mxu0 0
      %1109 = vmatprep.subr.bf16.mxu0 0
      %1110 = vmatpush2.bf16.msra.mxu0 0
      %1111 = vmatprep.subr.bf16.mxu0 0
      %1112 = vmatpush2.bf16.msra.mxu0 0
      %1113 = vmatprep.subr.bf16.mxu0 0
      %1114 = vmatpush2.bf16.msra.mxu0 0
      %1115 = vmatprep.subr.bf16.mxu0 0
      %1116 = vmatpush2.bf16.msra.mxu0 0
      %1117 = vmatprep.mubr.bf16.mxu0 0
      %1118 = vmatmul.mubr.bf16.gmra.mxu0 %v1081
      %v1119 = vpop.f32.mrf.mxu0
      %v1120 = vadd.f32 0.0, %v1119
      %v1121 = vpop.f32.mrf.mxu0
      %v1122 = vpop.f32.mrf.mxu0
      %v1123 = vpop.f32.mrf.mxu0
      %1124 = vdwg.mxu0
      %v1126 = vsel %vm1033, %v1027, 0
      %v1128 = vsel %vm1037, %v481, 0
      %1130 = vmatprep.subr.bf16.mxu0 0
      %1131 = vmatpush1.bf16.msra.mxu0 0
      %1132 = vmatprep.subr.bf16.mxu0 0
      %1133 = vmatpush1.bf16.msra.mxu0 0
      %1134 = vmatprep.subr.bf16.mxu0 0
      %1135 = vmatpush1.bf16.msra.mxu0 0
      %1136 = vmatprep.subr.bf16.mxu0 0
      %1137 = vmatpush1.bf16.msra.mxu0 0
      %1138 = vmatprep.subr.bf16.mxu0 0
      %1139 = vmatpush1.bf16.msra.mxu0 0
      %1140 = vmatprep.subr.bf16.mxu0 0
      %1141 = vmatpush1.bf16.msra.mxu0 0
      %1142 = vmatprep.subr.bf16.mxu0 0
      %1143 = vmatpush1.bf16.msra.mxu0 0
      %1144 = vmatprep.subr.bf16.mxu0 0
      %1145 = vmatpush1.bf16.msra.mxu0 %v1128
      %1146 = vmatprep.subr.bf16.mxu0 0
      %1147 = vmatpush2.bf16.msra.mxu0 0
      %1148 = vmatprep.subr.bf16.mxu0 0
      %1149 = vmatpush2.bf16.msra.mxu0 0
      %1150 = vmatprep.subr.bf16.mxu0 0
      %1151 = vmatpush2.bf16.msra.mxu0 0
      %1152 = vmatprep.subr.bf16.mxu0 0
      %1153 = vmatpush2.bf16.msra.mxu0 0
      %1154 = vmatprep.subr.bf16.mxu0 0
      %1155 = vmatpush2.bf16.msra.mxu0 0
      %1156 = vmatprep.subr.bf16.mxu0 0
      %1157 = vmatpush2.bf16.msra.mxu0 0
      %1158 = vmatprep.subr.bf16.mxu0 0
      %1159 = vmatpush2.bf16.msra.mxu0 0
      %1160 = vmatprep.subr.bf16.mxu0 0
      %1161 = vmatpush2.bf16.msra.mxu0 0
      %1162 = vmatprep.mubr.bf16.mxu0 0
      %1163 = vmatmul.mubr.bf16.gmra.mxu0 %v1126
      %v1164 = vpop.f32.mrf.mxu0
      %v1165 = vadd.f32 0.0, %v1164
      %v1166 = vpop.f32.mrf.mxu0
      %v1167 = vpop.f32.mrf.mxu0
      %v1168 = vpop.f32.mrf.mxu0
      %1169 = vdwg.mxu0
      %v1171 = vsel %vm1033, %v1028, 0
      %v1173 = vsel %vm1037, %v482, 0
      %1175 = vmatprep.subr.bf16.mxu0 0
      %1176 = vmatpush1.bf16.msra.mxu0 0
      %1177 = vmatprep.subr.bf16.mxu0 0
      %1178 = vmatpush1.bf16.msra.mxu0 0
      %1179 = vmatprep.subr.bf16.mxu0 0
      %1180 = vmatpush1.bf16.msra.mxu0 0
      %1181 = vmatprep.subr.bf16.mxu0 0
      %1182 = vmatpush1.bf16.msra.mxu0 0
      %1183 = vmatprep.subr.bf16.mxu0 0
      %1184 = vmatpush1.bf16.msra.mxu0 0
      %1185 = vmatprep.subr.bf16.mxu0 0
      %1186 = vmatpush1.bf16.msra.mxu0 0
      %1187 = vmatprep.subr.bf16.mxu0 0
      %1188 = vmatpush1.bf16.msra.mxu0 0
      %1189 = vmatprep.subr.bf16.mxu0 0
      %1190 = vmatpush1.bf16.msra.mxu0 %v1173
      %1191 = vmatprep.subr.bf16.mxu0 0
      %1192 = vmatpush2.bf16.msra.mxu0 0
      %1193 = vmatprep.subr.bf16.mxu0 0
      %1194 = vmatpush2.bf16.msra.mxu0 0
      %1195 = vmatprep.subr.bf16.mxu0 0
      %1196 = vmatpush2.bf16.msra.mxu0 0
      %1197 = vmatprep.subr.bf16.mxu0 0
      %1198 = vmatpush2.bf16.msra.mxu0 0
      %1199 = vmatprep.subr.bf16.mxu0 0
      %1200 = vmatpush2.bf16.msra.mxu0 0
      %1201 = vmatprep.subr.bf16.mxu0 0
      %1202 = vmatpush2.bf16.msra.mxu0 0
      %1203 = vmatprep.subr.bf16.mxu0 0
      %1204 = vmatpush2.bf16.msra.mxu0 0
      %1205 = vmatprep.subr.bf16.mxu0 0
      %1206 = vmatpush2.bf16.msra.mxu0 0
      %1207 = vmatprep.mubr.bf16.mxu0 0
      %1208 = vmatmul.mubr.bf16.gmra.mxu0 %v1171
      %v1209 = vpop.f32.mrf.mxu0
      %v1210 = vadd.f32 0.0, %v1209
      %v1211 = vpop.f32.mrf.mxu0
      %v1212 = vpop.f32.mrf.mxu0
      %v1213 = vpop.f32.mrf.mxu0
      %1214 = vdwg.mxu0
      %v1216 = vsel %vm1033, %v1029, 0
      %v1218 = vsel %vm1037, %v483, 0
      %1220 = vmatprep.subr.bf16.mxu0 0
      %1221 = vmatpush1.bf16.msra.mxu0 0
      %1222 = vmatprep.subr.bf16.mxu0 0
      %1223 = vmatpush1.bf16.msra.mxu0 0
      %1224 = vmatprep.subr.bf16.mxu0 0
      %1225 = vmatpush1.bf16.msra.mxu0 0
      %1226 = vmatprep.subr.bf16.mxu0 0
      %1227 = vmatpush1.bf16.msra.mxu0 0
      %1228 = vmatprep.subr.bf16.mxu0 0
      %1229 = vmatpush1.bf16.msra.mxu0 0
      %1230 = vmatprep.subr.bf16.mxu0 0
      %1231 = vmatpush1.bf16.msra.mxu0 0
      %1232 = vmatprep.subr.bf16.mxu0 0
      %1233 = vmatpush1.bf16.msra.mxu0 0
      %1234 = vmatprep.subr.bf16.mxu0 0
      %1235 = vmatpush1.bf16.msra.mxu0 %v1218
      %1236 = vmatprep.subr.bf16.mxu0 0
      %1237 = vmatpush2.bf16.msra.mxu0 0
      %1238 = vmatprep.subr.bf16.mxu0 0
      %1239 = vmatpush2.bf16.msra.mxu0 0
      %1240 = vmatprep.subr.bf16.mxu0 0
      %1241 = vmatpush2.bf16.msra.mxu0 0
      %1242 = vmatprep.subr.bf16.mxu0 0
      %1243 = vmatpush2.bf16.msra.mxu0 0
      %1244 = vmatprep.subr.bf16.mxu0 0
      %1245 = vmatpush2.bf16.msra.mxu0 0
      %1246 = vmatprep.subr.bf16.mxu0 0
      %1247 = vmatpush2.bf16.msra.mxu0 0
      %1248 = vmatprep.subr.bf16.mxu0 0
      %1249 = vmatpush2.bf16.msra.mxu0 0
      %1250 = vmatprep.subr.bf16.mxu0 0
      %1251 = vmatpush2.bf16.msra.mxu0 0
      %1252 = vmatprep.mubr.bf16.mxu0 0
      %1253 = vmatmul.mubr.bf16.gmra.mxu0 %v1216
      %v1254 = vpop.f32.mrf.mxu0
      %v1255 = vadd.f32 0.0, %v1254
      %v1256 = vpop.f32.mrf.mxu0
      %v1257 = vpop.f32.mrf.mxu0
      %v1258 = vpop.f32.mrf.mxu0
      %1259 = vdwg.mxu0
      %v1261 = vsel %vm1033, %v1030, 0
      %v1263 = vsel %vm1037, %v484, 0
      %1265 = vmatprep.subr.bf16.mxu0 0
      %1266 = vmatpush1.bf16.msra.mxu0 0
      %1267 = vmatprep.subr.bf16.mxu0 0
      %1268 = vmatpush1.bf16.msra.mxu0 0
      %1269 = vmatprep.subr.bf16.mxu0 0
      %1270 = vmatpush1.bf16.msra.mxu0 0
      %1271 = vmatprep.subr.bf16.mxu0 0
      %1272 = vmatpush1.bf16.msra.mxu0 0
      %1273 = vmatprep.subr.bf16.mxu0 0
      %1274 = vmatpush1.bf16.msra.mxu0 0
      %1275 = vmatprep.subr.bf16.mxu0 0
      %1276 = vmatpush1.bf16.msra.mxu0 0
      %1277 = vmatprep.subr.bf16.mxu0 0
      %1278 = vmatpush1.bf16.msra.mxu0 0
      %1279 = vmatprep.subr.bf16.mxu0 0
      %1280 = vmatpush1.bf16.msra.mxu0 %v1263
      %1281 = vmatprep.subr.bf16.mxu0 0
      %1282 = vmatpush2.bf16.msra.mxu0 0
      %1283 = vmatprep.subr.bf16.mxu0 0
      %1284 = vmatpush2.bf16.msra.mxu0 0
      %1285 = vmatprep.subr.bf16.mxu0 0
      %1286 = vmatpush2.bf16.msra.mxu0 0
      %1287 = vmatprep.subr.bf16.mxu0 0
      %1288 = vmatpush2.bf16.msra.mxu0 0
      %1289 = vmatprep.subr.bf16.mxu0 0
      %1290 = vmatpush2.bf16.msra.mxu0 0
      %1291 = vmatprep.subr.bf16.mxu0 0
      %1292 = vmatpush2.bf16.msra.mxu0 0
      %1293 = vmatprep.subr.bf16.mxu0 0
      %1294 = vmatpush2.bf16.msra.mxu0 0
      %1295 = vmatprep.subr.bf16.mxu0 0
      %1296 = vmatpush2.bf16.msra.mxu0 0
      %1297 = vmatprep.mubr.bf16.mxu0 0
      %1298 = vmatmul.mubr.bf16.gmra.mxu0 %v1261
      %v1299 = vpop.f32.mrf.mxu0
      %v1300 = vadd.f32 0.0, %v1299
      %v1301 = vpop.f32.mrf.mxu0
      %v1302 = vpop.f32.mrf.mxu0
      %v1303 = vpop.f32.mrf.mxu0
      %1304 = vdwg.mxu0
      %v1306 = vsel %vm1033, %v1031, 0
      %v1308 = vsel %vm1037, %v485, 0
      %1310 = vmatprep.subr.bf16.mxu0 0
      %1311 = vmatpush1.bf16.msra.mxu0 0
      %1312 = vmatprep.subr.bf16.mxu0 0
      %1313 = vmatpush1.bf16.msra.mxu0 0
      %1314 = vmatprep.subr.bf16.mxu0 0
      %1315 = vmatpush1.bf16.msra.mxu0 0
      %1316 = vmatprep.subr.bf16.mxu0 0
      %1317 = vmatpush1.bf16.msra.mxu0 0
      %1318 = vmatprep.subr.bf16.mxu0 0
      %1319 = vmatpush1.bf16.msra.mxu0 0
      %1320 = vmatprep.subr.bf16.mxu0 0
      %1321 = vmatpush1.bf16.msra.mxu0 0
      %1322 = vmatprep.subr.bf16.mxu0 0
      %1323 = vmatpush1.bf16.msra.mxu0 0
      %1324 = vmatprep.subr.bf16.mxu0 0
      %1325 = vmatpush1.bf16.msra.mxu0 %v1308
      %1326 = vmatprep.subr.bf16.mxu0 0
      %1327 = vmatpush2.bf16.msra.mxu0 0
      %1328 = vmatprep.subr.bf16.mxu0 0
      %1329 = vmatpush2.bf16.msra.mxu0 0
      %1330 = vmatprep.subr.bf16.mxu0 0
      %1331 = vmatpush2.bf16.msra.mxu0 0
      %1332 = vmatprep.subr.bf16.mxu0 0
      %1333 = vmatpush2.bf16.msra.mxu0 0
      %1334 = vmatprep.subr.bf16.mxu0 0
      %1335 = vmatpush2.bf16.msra.mxu0 0
      %1336 = vmatprep.subr.bf16.mxu0 0
      %1337 = vmatpush2.bf16.msra.mxu0 0
      %1338 = vmatprep.subr.bf16.mxu0 0
      %1339 = vmatpush2.bf16.msra.mxu0 0
      %1340 = vmatprep.subr.bf16.mxu0 0
      %1341 = vmatpush2.bf16.msra.mxu0 0
      %1342 = vmatprep.mubr.bf16.mxu0 0
      %1343 = vmatmul.mubr.bf16.gmra.mxu0 %v1306
      %v1344 = vpop.f32.mrf.mxu0
      %v1345 = vadd.f32 0.0, %v1344
      %v1346 = vpop.f32.mrf.mxu0
      %v1347 = vpop.f32.mrf.mxu0
      %v1348 = vpop.f32.mrf.mxu0
      %1349 = vdwg.mxu0
      %v1351 = vsel %vm1033, %v1032, 0
      %v1353 = vsel %vm1037, %v486, 0
      %1355 = vmatprep.subr.bf16.mxu0 0
      %1356 = vmatpush1.bf16.msra.mxu0 0
      %1357 = vmatprep.subr.bf16.mxu0 0
      %1358 = vmatpush1.bf16.msra.mxu0 0
      %1359 = vmatprep.subr.bf16.mxu0 0
      %1360 = vmatpush1.bf16.msra.mxu0 0
      %1361 = vmatprep.subr.bf16.mxu0 0
      %1362 = vmatpush1.bf16.msra.mxu0 0
      %1363 = vmatprep.subr.bf16.mxu0 0
      %1364 = vmatpush1.bf16.msra.mxu0 0
      %1365 = vmatprep.subr.bf16.mxu0 0
      %1366 = vmatpush1.bf16.msra.mxu0 0
      %1367 = vmatprep.subr.bf16.mxu0 0
      %1368 = vmatpush1.bf16.msra.mxu0 0
      %1369 = vmatprep.subr.bf16.mxu0 0
      %1370 = vmatpush1.bf16.msra.mxu0 %v1353
      %1371 = vmatprep.subr.bf16.mxu0 0
      %1372 = vmatpush2.bf16.msra.mxu0 0
      %1373 = vmatprep.subr.bf16.mxu0 0
      %1374 = vmatpush2.bf16.msra.mxu0 0
      %1375 = vmatprep.subr.bf16.mxu0 0
      %1376 = vmatpush2.bf16.msra.mxu0 0
      %1377 = vmatprep.subr.bf16.mxu0 0
      %1378 = vmatpush2.bf16.msra.mxu0 0
      %1379 = vmatprep.subr.bf16.mxu0 0
      %1380 = vmatpush2.bf16.msra.mxu0 0
      %1381 = vmatprep.subr.bf16.mxu0 0
      %1382 = vmatpush2.bf16.msra.mxu0 0
      %1383 = vmatprep.subr.bf16.mxu0 0
      %1384 = vmatpush2.bf16.msra.mxu0 0
      %1385 = vmatprep.subr.bf16.mxu0 0
      %1386 = vmatpush2.bf16.msra.mxu0 0
      %1387 = vmatprep.mubr.bf16.mxu0 0
      %1388 = vmatmul.mubr.bf16.gmra.mxu0 %v1351
      %v1389 = vpop.f32.mrf.mxu0
      %v1390 = vadd.f32 0.0, %v1389
      %v1391 = vpop.f32.mrf.mxu0
      %v1392 = vpop.f32.mrf.mxu0
      %v1393 = vpop.f32.mrf.mxu0
      %1394 = vdwg.mxu0
      %v1395 = vpack.c.bf16 %v1075, %v1075
      %v1396 = vpack.c.bf16 %v1120, %v1120
      %v1397 = vpack.c.bf16 %v1165, %v1165
      %v1398 = vpack.c.bf16 %v1210, %v1210
      %v1399 = vpack.c.bf16 %v1255, %v1255
      %v1400 = vpack.c.bf16 %v1300, %v1300
      %v1401 = vpack.c.bf16 %v1345, %v1345
      %v1402 = vpack.c.bf16 %v1390, %v1390
      %v1403 = vld [vmem:[#allocation3] sm:$0xf]
      %v1404 = vld [vmem:[#allocation3 + $0x4] sm:$0xf]
      %v1405 = vld [vmem:[#allocation3 + $0x8] sm:$0xf]
      %v1406 = vld [vmem:[#allocation3 + $0xc] sm:$0xf]
      %s1407 = scalar_lea.vmem [#allocation3], 16
      %v1408 = vld [vmem:[%s1407] sm:$0xf]
      %v1409 = vld [vmem:[%s1407 + $0x4] sm:$0xf]
      %v1410 = vld [vmem:[%s1407 + $0x8] sm:$0xf]
      %v1411 = vld [vmem:[%s1407 + $0xc] sm:$0xf]
      %v1420 = vunpack.c.l.b16 %v1395
      %v1421 = vunpack.c.l.b16 %v1396
      %v1422 = vunpack.c.l.b16 %v1397
      %v1423 = vunpack.c.l.b16 %v1398
      %v1424 = vunpack.c.l.b16 %v1399
      %v1425 = vunpack.c.l.b16 %v1400
      %v1426 = vunpack.c.l.b16 %v1401
      %v1427 = vunpack.c.l.b16 %v1402
      %v1428 = vrot.slane %v1421, 7
      %vm1429 = vcmask 1041409
      %v1430 = vsel %vm1429, %v1428, %v1420
      %v1431 = vrot.slane %v1422, 6
      %vm1432 = vcmask 1042434
      %v1433 = vsel %vm1432, %v1431, %v1430
      %v1434 = vrot.slane %v1423, 5
      %vm1435 = vcmask 1043459
      %v1436 = vsel %vm1435, %v1434, %v1433
      %v1437 = vrot.slane %v1424, 4
      %vm1438 = vcmask 1044484
      %v1439 = vsel %vm1438, %v1437, %v1436
      %v1440 = vrot.slane %v1425, 3
      %vm1441 = vcmask 1045509
      %v1442 = vsel %vm1441, %v1440, %v1439
      %v1443 = vrot.slane %v1426, 2
      %vm1444 = vcmask 1046534
      %v1445 = vsel %vm1444, %v1443, %v1442
      %v1446 = vrot.slane %v1427, 1
      %vm1447 = vcmask 1047559
      %v1448 = vsel %vm1447, %v1446, %v1445
      %v1449 = vpack.c.b16 %v1448, %v1448
      %v1454 = vunpack.c.l.b16 %v1408
      %v1455 = vunpack.c.l.b16 %v1409
      %v1456 = vunpack.c.l.b16 %v1410
      %v1457 = vunpack.c.l.b16 %v1411
      %v1458 = vpack.c.b16 %v1455, %v1454
      %v1459 = vpack.c.b16 %v1457, %v1456
      %v1463 = vsel %vm86, %v1449, 0
      %1465 = vmatprep.subr.bf16.mxu0 0
      %1466 = vmatpush1.bf16.msra.mxu0 0
      %1467 = vmatprep.subr.bf16.mxu0 0
      %1468 = vmatpush1.bf16.msra.mxu0 0
      %1469 = vmatprep.subr.bf16.mxu0 0
      %1470 = vmatpush1.bf16.msra.mxu0 0
      %1471 = vmatprep.subr.bf16.mxu0 0
      %1472 = vmatpush1.bf16.msra.mxu0 0
      %1473 = vmatprep.subr.bf16.mxu0 0
      %1474 = vmatpush1.bf16.msra.mxu0 0
      %1475 = vmatprep.subr.bf16.mxu0 0
      %1476 = vmatpush1.bf16.msra.mxu0 0
      %1477 = vmatprep.subr.bf16.mxu0 0
      %1478 = vmatpush1.bf16.msra.mxu0 %v1459
      %1479 = vmatprep.subr.bf16.mxu0 0
      %1480 = vmatpush1.bf16.msra.mxu0 %v1458
      %1481 = vmatprep.subr.bf16.mxu0 0
      %1482 = vmatpush2.bf16.msra.mxu0 0
      %1483 = vmatprep.subr.bf16.mxu0 0
      %1484 = vmatpush2.bf16.msra.mxu0 0
      %1485 = vmatprep.subr.bf16.mxu0 0
      %1486 = vmatpush2.bf16.msra.mxu0 0
      %1487 = vmatprep.subr.bf16.mxu0 0
      %1488 = vmatpush2.bf16.msra.mxu0 0
      %1489 = vmatprep.subr.bf16.mxu0 0
      %1490 = vmatpush2.bf16.msra.mxu0 0
      %1491 = vmatprep.subr.bf16.mxu0 0
      %1492 = vmatpush2.bf16.msra.mxu0 0
      %1493 = vmatprep.subr.bf16.mxu0 0
      %1494 = vmatpush2.bf16.msra.mxu0 0
      %1495 = vmatprep.subr.bf16.mxu0 0
      %1496 = vmatpush2.bf16.msra.mxu0 0
      %1497 = vmatprep.mubr.bf16.mxu0 0
      %1498 = vmatmul.mubr.bf16.gmra.mxu0 %v1463
      %v1499 = vpop.f32.mrf.mxu0
      %v1500 = vadd.f32 0.0, %v1499
      %v1501 = vpop.f32.mrf.mxu0
      %v1502 = vpop.f32.mrf.mxu0
      %v1503 = vpop.f32.mrf.mxu0
      %1504 = vdwg.mxu0
      %v1509 = vunpack.c.l.b16 %v1403
      %v1510 = vunpack.c.l.b16 %v1404
      %v1511 = vunpack.c.l.b16 %v1405
      %v1512 = vunpack.c.l.b16 %v1406
      %v1513 = vpack.c.b16 %v1510, %v1509
      %v1514 = vpack.c.b16 %v1512, %v1511
      %v1518 = vsel %vm86, %v478, 0
      %1520 = vmatprep.subr.bf16.mxu0 0
      %1521 = vmatpush1.bf16.msra.mxu0 0
      %1522 = vmatprep.subr.bf16.mxu0 0
      %1523 = vmatpush1.bf16.msra.mxu0 0
      %1524 = vmatprep.subr.bf16.mxu0 0
      %1525 = vmatpush1.bf16.msra.mxu0 0
      %1526 = vmatprep.subr.bf16.mxu0 0
      %1527 = vmatpush1.bf16.msra.mxu0 0
      %1528 = vmatprep.subr.bf16.mxu0 0
      %1529 = vmatpush1.bf16.msra.mxu0 0
      %1530 = vmatprep.subr.bf16.mxu0 0
      %1531 = vmatpush1.bf16.msra.mxu0 0
      %1532 = vmatprep.subr.bf16.mxu0 0
      %1533 = vmatpush1.bf16.msra.mxu0 %v1514
      %1534 = vmatprep.subr.bf16.mxu0 0
      %1535 = vmatpush1.bf16.msra.mxu0 %v1513
      %1536 = vmatprep.subr.bf16.mxu0 0
      %1537 = vmatpush2.bf16.msra.mxu0 0
      %1538 = vmatprep.subr.bf16.mxu0 0
      %1539 = vmatpush2.bf16.msra.mxu0 0
      %1540 = vmatprep.subr.bf16.mxu0 0
      %1541 = vmatpush2.bf16.msra.mxu0 0
      %1542 = vmatprep.subr.bf16.mxu0 0
      %1543 = vmatpush2.bf16.msra.mxu0 0
      %1544 = vmatprep.subr.bf16.mxu0 0
      %1545 = vmatpush2.bf16.msra.mxu0 0
      %1546 = vmatprep.subr.bf16.mxu0 0
      %1547 = vmatpush2.bf16.msra.mxu0 0
      %1548 = vmatprep.subr.bf16.mxu0 0
      %1549 = vmatpush2.bf16.msra.mxu0 0
      %1550 = vmatprep.subr.bf16.mxu0 0
      %1551 = vmatpush2.bf16.msra.mxu0 0
      %1552 = vmatprep.mubr.bf16.mxu0 0
      %1553 = vmatmul.mubr.bf16.gmra.mxu0 %v1518
      %v1554 = vpop.f32.mrf.mxu0
      %v1555 = vadd.f32 %v1500, %v1554
      %v1556 = vpop.f32.mrf.mxu0
      %v1557 = vpop.f32.mrf.mxu0
      %v1558 = vpop.f32.mrf.mxu0
      %1559 = vdwg.mxu0
      %v1560 = vld [vmem:[%s8] sm:$0x1]
      %v1562 = vlaneseq
      %v1563 = vshrl.u32 %v1562, 7
      %v1564 = vsub.s32 0, %v1563
      %v1565 = vrot.slane %v1560, %v1564
      %v1567 = vadd.f32 %v1555, %v1565
      %v1568 = vtanh.pop %v1567
      %v1569 = vpack.c.bf16 %v1568, %v1568
      %vm1570 = vcmask 257024
      %1571 = vst.msk [vmem:[#allocation2] sm:$0xf] %vm1570, %v1569
    $region53: #{attn_decoder_step.1} parent=1 // pred_fallthru
      _
    %v1572 = vld [vmem:[#allocation2] sm:$0xf]
    %v1573 = vld [vmem:[%s9] sm:$0xf]
    %v1574 = vld [vmem:[%s9 + $0x4] sm:$0xf]
    %v1575 = vld [vmem:[%s9 + $0x8] sm:$0xf]
    %v1576 = vld [vmem:[%s9 + $0xc] sm:$0xf]
    %v1577 = vld [vmem:[%s10] sm:$0x1]
    %v1579 = vlaneseq
    %v1580 = vshrl.u32 %v1579, 7
    %v1581 = vsub.s32 0, %v1580
    %v1582 = vrot.slane %v1577, %v1581
    %v1588 = vunpack.c.l.b16 %v1573
    %v1589 = vunpack.c.l.b16 %v1574
    %v1590 = vunpack.c.l.b16 %v1575
    %v1591 = vunpack.c.l.b16 %v1576
    %v1592 = vpack.c.b16 %v1589, %v1588
    %v1593 = vpack.c.b16 %v1591, %v1590
    %vm1596 = vcmask 261120
    %v1598 = vsel %vm1596, %v1572, 0
    %1600 = vmatprep.subr.bf16.mxu0 0
    %1601 = vmatpush1.bf16.msra.mxu0 0
    %1602 = vmatprep.subr.bf16.mxu0 0
    %1603 = vmatpush1.bf16.msra.mxu0 0
    %1604 = vmatprep.subr.bf16.mxu0 0
    %1605 = vmatpush1.bf16.msra.mxu0 0
    %1606 = vmatprep.subr.bf16.mxu0 0
    %1607 = vmatpush1.bf16.msra.mxu0 0
    %1608 = vmatprep.subr.bf16.mxu0 0
    %1609 = vmatpush1.bf16.msra.mxu0 0
    %1610 = vmatprep.subr.bf16.mxu0 0
    %1611 = vmatpush1.bf16.msra.mxu0 0
    %1612 = vmatprep.subr.bf16.mxu0 0
    %1613 = vmatpush1.bf16.msra.mxu0 %v1593
    %1614 = vmatprep.subr.bf16.mxu0 0
    %1615 = vmatpush1.bf16.msra.mxu0 %v1592
    %1616 = vmatprep.subr.bf16.mxu0 0
    %1617 = vmatpush2.bf16.msra.mxu0 0
    %1618 = vmatprep.subr.bf16.mxu0 0
    %1619 = vmatpush2.bf16.msra.mxu0 0
    %1620 = vmatprep.subr.bf16.mxu0 0
    %1621 = vmatpush2.bf16.msra.mxu0 0
    %1622 = vmatprep.subr.bf16.mxu0 0
    %1623 = vmatpush2.bf16.msra.mxu0 0
    %1624 = vmatprep.subr.bf16.mxu0 0
    %1625 = vmatpush2.bf16.msra.mxu0 0
    %1626 = vmatprep.subr.bf16.mxu0 0
    %1627 = vmatpush2.bf16.msra.mxu0 0
    %1628 = vmatprep.subr.bf16.mxu0 0
    %1629 = vmatpush2.bf16.msra.mxu0 0
    %1630 = vmatprep.subr.bf16.mxu0 0
    %1631 = vmatpush2.bf16.msra.mxu0 0
    %1632 = vmatprep.mubr.bf16.mxu0 0
    %1633 = vmatmul.mubr.bf16.gmra.mxu0 %v1598
    %v1634 = vpop.f32.mrf.mxu0
    %v1635 = vadd.f32 %v1582, %v1634
    %v1636 = vpop.f32.mrf.mxu0
    %v1637 = vpop.f32.mrf.mxu0
    %v1638 = vpop.f32.mrf.mxu0
    %1639 = vdwg.mxu0
    %1640 = vst [vmem:[%s11] sm:$0xff] %v1635
    // Predicated region
    $region54: #{attn_decoder_step.1} parent=1 // pred_check
      _
    $region55: #{attn_decoder_step.1} parent=1 // pred_check_branch
      %1642 = sbr.rel (0) target = $region57
    $region56: #{attn_decoder_step.1} parent=1 // pred_region
      _
    $region57: #{attn_decoder_step.1} parent=1 // pred_fallthru
      _
    // Predicated region
    $region58: #{attn_decoder_step.1} parent=1 // pred_check
      _
    $region59: #{attn_decoder_step.1} parent=1 // pred_check_branch
      %1644 = sbr.rel (0) target = $region61
    $region60: #{attn_decoder_step.1} parent=1 // pred_region
      _
    $region61: #{attn_decoder_step.1} parent=1 // pred_fallthru
      _
    // Predicated region
    $region62: #{attn_decoder_step.1} parent=1 // pred_check
      _
    $region63: #{attn_decoder_step.1} parent=1 // pred_check_branch
      %1646 = sbr.rel (0) target = $region65
    $region64: #{attn_decoder_step.1} parent=1 // pred_region
      _
    $region65: #{attn_decoder_step.1} parent=1 // pred_fallthru
      _
    // Predicated region
    $region66: #{attn_decoder_step.1} parent=1 // pred_check
      _
    $region67: #{attn_decoder_step.1} parent=1 // pred_check_branch
      %1648 = sbr.rel (0) target = $region69
    $region68: #{attn_decoder_step.1} parent=1 // pred_region
      _
    $region69: #{attn_decoder_step.1} parent=1 // pred_fallthru
      _
    // Predicated region
    $region70: #{attn_decoder_step.1} parent=1 // pred_check
      _
    $region71: #{attn_decoder_step.1} parent=1 // pred_check_branch
      %1650 = sbr.rel (0) target = $region73
    $region72: #{attn_decoder_step.1} parent=1 // pred_region
      _
    $region73: #{attn_decoder_step.1} parent=1 // pred_fallthru
      _
    // Predicated region
    $region74: #{attn_decoder_step.1} parent=1 // pred_check
      _
    $region75: #{attn_decoder_step.1} parent=1 // pred_check_branch
      %1652 = sbr.rel (0) target = $region77
    $region76: #{attn_decoder_step.1} parent=1 // pred_region
      _
    $region77: #{attn_decoder_step.1} parent=1 // pred_fallthru
      _
    %1653 = vsyncpa [#allocation4], 1

</llo_original>
